<compile_context>
chip_gen: v5e
topology: v5e:2x2
jax: 0.10.0
libtpu: 0.0.40
codegen_flags: <defaults>
</compile_context>

<pallas_src>
import jax
import jax.numpy as jnp
import numpy as np
from jax.experimental import pallas as pl
from jax.experimental.pallas import tpu as pltpu

# ----------------------------- configuration --------------------------------
B, S, H = 2, 8, 32          # batch, sequence length, hidden size
NH = 2                      # attention heads
HD = H // NH                # head dim
F = 64                      # FFN intermediate size
L = 2                       # encoder layers
VOCAB = 100                 # vocab size
NUM_LABELS = 2              # classification labels
LOGIT_PAD = 128             # lane-dense padded head width (sliced in wrapper)
LN_EPS = 1e-12
MASK_NEG = -1e9


# --------------------------- shared math helpers ----------------------------
def _layernorm(x, gamma, beta):
    mu = jnp.mean(x, axis=-1, keepdims=True)
    var = jnp.mean(jnp.square(x - mu), axis=-1, keepdims=True)
    return (x - mu) * jax.lax.rsqrt(var + LN_EPS) * gamma + beta


def _gelu(x):
    # tanh approximation of GELU (keeps lowering simple inside the kernel)
    c = 0.7978845608028654  # sqrt(2/pi)
    return 0.5 * x * (1.0 + jnp.tanh(c * (x + 0.044715 * x * x * x)))


# ------------------------------ Pallas kernel --------------------------------
def model_kernel(x_ref, bias_ref, wqkv_ref, wo_ref, w1_ref, w2_ref,
                 ln_ref, head_ref, out_ref):
    """One batch element of the cross-encoder forward (one grid step).

    Refs (per-step views):
      x      : (S, H)            summed embeddings (pre-LayerNorm)
      bias   : (1, S)            additive attention-mask bias (precomputed)
      wqkv   : (L*NH*3, H+1, HD) per-head Q/K/V weights, bias as last row
      wo     : (L, H+1, H)       attention output projection (+ bias row)
      w1     : (L, H+1, F)       FFN up   (+ bias row)
      w2     : (L, F+1, H)       FFN down (+ bias row)
      ln     : (2+4L, H)         [emb_g, emb_b, (ln1g, ln1b, ln2g, ln2b) x L]
      head   : (2, H+1, 128)     [0]=pooler w+b (lane-padded), [1]=classifier
      out    : (S, 128)          lane/sublane-dense padded logits tile
    """
    h = _layernorm(x_ref[...], ln_ref[0:1, :], ln_ref[1:2, :])
    bias = bias_ref[...]                     # (1, S), hoisted out of all loops
    scale = 1.0 / (HD ** 0.5)

    for l in range(L):                       # static unroll; weights stay resident
        ctx_heads = []
        for hh in range(NH):                 # per-head weights -> no lane extracts
            base = (l * NH + hh) * 3
            q = jnp.dot(h, wqkv_ref[base + 0, :H, :],
                        preferred_element_type=jnp.float32) + wqkv_ref[base + 0, H:H + 1, :]
            k = jnp.dot(h, wqkv_ref[base + 1, :H, :],
                        preferred_element_type=jnp.float32) + wqkv_ref[base + 1, H:H + 1, :]
            v = jnp.dot(h, wqkv_ref[base + 2, :H, :],
                        preferred_element_type=jnp.float32) + wqkv_ref[base + 2, H:H + 1, :]
            s = jnp.einsum('qd,kd->qk', q, k,
                           preferred_element_type=jnp.float32) * scale + bias
            m = jnp.max(s, axis=-1, keepdims=True)
            p = jnp.exp(s - m)
            p = p * pl.reciprocal(jnp.sum(p, axis=-1, keepdims=True), approx=True)
            ctx_heads.append(jnp.dot(p, v, preferred_element_type=jnp.float32))
        ctx = jnp.concatenate(ctx_heads, axis=-1)                       # (S, H)
        attn_out = (jnp.dot(ctx, wo_ref[l, :H, :],
                            preferred_element_type=jnp.float32)
                    + wo_ref[l, H:H + 1, :])

        h1 = _layernorm(h + attn_out,
                        ln_ref[2 + 4 * l:3 + 4 * l, :], ln_ref[3 + 4 * l:4 + 4 * l, :])

        ffn = _gelu(jnp.dot(h1, w1_ref[l, :H, :],
                            preferred_element_type=jnp.float32) + w1_ref[l, H:H + 1, :])
        ffn_out = (jnp.dot(ffn, w2_ref[l, :F, :],
                           preferred_element_type=jnp.float32) + w2_ref[l, F:F + 1, :])
        h = _layernorm(h1 + ffn_out,
                       ln_ref[4 + 4 * l:5 + 4 * l, :], ln_ref[5 + 4 * l:6 + 4 * l, :])

    # pooler(tanh) + classifier applied to all S rows (row 0 = [CLS]); full
    # (8,128) unmasked store, wrapper slices [:, 0, :NUM_LABELS].
    pooled = jnp.tanh(jnp.dot(h, head_ref[0, :H, :],
                              preferred_element_type=jnp.float32)
                      + head_ref[0, H:H + 1, :])                        # (S, 128)
    out_ref[...] = (jnp.dot(pooled[:, :H], head_ref[1, :H, :],
                            preferred_element_type=jnp.float32)
                    + head_ref[1, H:H + 1, :])


# ------------------------------ host wrappers --------------------------------
def fuse_params(p):
    """Repack raw parameters into the consolidated slabs the kernel expects.

    Done ONCE at init (hoisted out of the per-call path).
    """
    # per-head Q/K/V weights with bias folded in as the last row
    wqkv = []
    for l in range(L):
        for hh in range(NH):
            sl = slice(hh * HD, (hh + 1) * HD)
            for (w, b) in ((p['wq'], p['bq']), (p['wk'], p['bk']), (p['wv'], p['bv'])):
                wqkv.append(jnp.concatenate([w[l][:, sl], b[l][:, sl]], axis=0))  # (H+1, HD)
    wqkv = jnp.stack(wqkv, axis=0)                                   # (L*NH*3, H+1, HD)

    wo_wb = jnp.concatenate([p['wo'], p['bo']], axis=1)              # (L, H+1, H)
    w1_wb = jnp.concatenate([p['w1'], p['b1']], axis=1)              # (L, H+1, F)
    w2_wb = jnp.concatenate([p['w2'], p['b2']], axis=1)              # (L, F+1, H)

    ln_rows = [p['emb_g'], p['emb_b']]
    for l in range(L):
        ln_rows += [p['ln1g'][l], p['ln1b'][l], p['ln2g'][l], p['ln2b'][l]]
    ln = jnp.concatenate(ln_rows, axis=0)                            # (2+4L, H)

    pool_pad = jnp.zeros((H + 1, LOGIT_PAD), jnp.float32)
    pool_pad = pool_pad.at[:H, :H].set(p['pooler_w']).at[H:H + 1, :H].set(p['pooler_b'])
    cls_pad = jnp.zeros((H + 1, LOGIT_PAD), jnp.float32)
    cls_pad = cls_pad.at[:H, :NUM_LABELS].set(p['cls_w']).at[H:H + 1, :NUM_LABELS].set(p['cls_b'])
    head = jnp.stack([pool_pad, cls_pad], axis=0)                    # (2, H+1, 128)

    return dict(wqkv=wqkv, wo=wo_wb, w1=w1_wb, w2=w2_wb, ln=ln, head=head)


def build_forward(params):
    """Build a jitted forward closure; fused slabs are created once here."""
    fp = fuse_params(params)
    word_emb, pos_emb, type_emb = params['word_emb'], params['pos_emb'], params['type_emb']

    call = pl.pallas_call(
        model_kernel,
        grid=(B,),
        in_specs=[
            pl.BlockSpec((None, S, H), lambda b: (b, 0, 0)),                # emb (per batch)
            pl.BlockSpec((None, 1, S), lambda b: (b, 0, 0)),                # mask bias
            pl.BlockSpec((L * NH * 3, H + 1, HD), lambda b: (0, 0, 0)),     # wqkv
            pl.BlockSpec((L, H + 1, H), lambda b: (0, 0, 0)),               # wo
            pl.BlockSpec((L, H + 1, F), lambda b: (0, 0, 0)),               # w1
            pl.BlockSpec((L, F + 1, H), lambda b: (0, 0, 0)),               # w2
            pl.BlockSpec((2 + 4 * L, H), lambda b: (0, 0)),                 # ln stack
            pl.BlockSpec((2, H + 1, LOGIT_PAD), lambda b: (0, 0, 0)),       # pooler+classifier
        ],
        out_specs=pl.BlockSpec((None, S, LOGIT_PAD), lambda b: (b, 0, 0)),
        out_shape=jax.ShapeDtypeStruct((B, S, LOGIT_PAD), jnp.float32),
        compiler_params=pltpu.CompilerParams(dimension_semantics=("parallel",)),
    )

    @jax.jit
    def forward(input_ids, attention_mask, token_type_ids):
        # embedding gather + mask math fused into the same compiled program
        emb = (word_emb[input_ids]
               + pos_emb[None, :, :]
               + type_emb[token_type_ids]).astype(jnp.float32)              # (B, S, H)
        mask_bias = ((1.0 - attention_mask.astype(jnp.float32)) * MASK_NEG)[:, None, :]
        out = call(emb, mask_bias, fp['wqkv'], fp['wo'], fp['w1'], fp['w2'],
                   fp['ln'], fp['head'])
        return out[:, 0, :NUM_LABELS]                                       # [CLS] logits

    return forward


# --------------------------- pure-JAX reference ------------------------------
def reference_forward(p, input_ids, attention_mask, token_type_ids):
    pos_ids = jnp.arange(S)
    x = (p['word_emb'][input_ids]
         + p['pos_emb'][pos_ids][None, :, :]
         + p['type_emb'][token_type_ids]).astype(jnp.float32)
    h = _layernorm(x, p['emb_g'], p['emb_b'])
    mask = attention_mask.astype(jnp.float32)
    bias = (1.0 - mask)[:, None, :] * MASK_NEG         # (B,1,S)
    scale = 1.0 / (HD ** 0.5)
    for l in range(L):
        q = h @ p['wq'][l] + p['bq'][l]
        k = h @ p['wk'][l] + p['bk'][l]
        v = h @ p['wv'][l] + p['bv'][l]
        qh = q.reshape(B, S, NH, HD)
        kh = k.reshape(B, S, NH, HD)
        vh = v.reshape(B, S, NH, HD)
        s = jnp.einsum('bqnd,bknd->bnqk', qh, kh) * scale + bias[:, None, :, :]
        pattn = jax.nn.softmax(s, axis=-1)
        ctx = jnp.einsum('bnqk,bknd->bqnd', pattn, vh).reshape(B, S, H)
        attn_out = ctx @ p['wo'][l] + p['bo'][l]
        h1 = _layernorm(h + attn_out, p['ln1g'][l], p['ln1b'][l])
        ffn = _gelu(h1 @ p['w1'][l] + p['b1'][l])
        h = _layernorm(h1 + ffn @ p['w2'][l] + p['b2'][l], p['ln2g'][l], p['ln2b'][l])
    cls = h[:, 0, :]
    pooled = jnp.tanh(cls @ p['pooler_w'] + p['pooler_b'])
    return pooled @ p['cls_w'] + p['cls_b']


# --------------------------------- main --------------------------------------
def make_params():
    keys = jax.random.split(jax.random.PRNGKey(0), 24)
    nrm = lambda k, shp: 0.02 * jax.random.normal(k, shp, jnp.float32)
    ones = lambda shp: jnp.ones(shp, jnp.float32)
    zeros = lambda shp: jnp.zeros(shp, jnp.float32)
    return dict(
        word_emb=nrm(keys[0], (VOCAB, H)),
        pos_emb=nrm(keys[1], (S, H)),
        type_emb=nrm(keys[2], (2, H)),
        emb_g=ones((1, H)), emb_b=zeros((1, H)),
        wq=nrm(keys[3], (L, H, H)), bq=nrm(keys[4], (L, 1, H)),
        wk=nrm(keys[5], (L, H, H)), bk=nrm(keys[6], (L, 1, H)),
        wv=nrm(keys[7], (L, H, H)), bv=nrm(keys[8], (L, 1, H)),
        wo=nrm(keys[9], (L, H, H)), bo=nrm(keys[10], (L, 1, H)),
        ln1g=ones((L, 1, H)), ln1b=zeros((L, 1, H)),
        w1=nrm(keys[11], (L, H, F)), b1=nrm(keys[12], (L, 1, F)),
        w2=nrm(keys[13], (L, F, H)), b2=nrm(keys[14], (L, 1, H)),
        ln2g=ones((L, 1, H)), ln2b=zeros((L, 1, H)),
        pooler_w=nrm(keys[15], (H, H)), pooler_b=nrm(keys[16], (1, H)),
        cls_w=nrm(keys[17], (H, NUM_LABELS)), cls_b=nrm(keys[18], (1, NUM_LABELS)),
    )


if __name__ == "__main__":
    params = make_params()
    forward = build_forward(params)

    ikey = jax.random.PRNGKey(0)
    input_ids = jax.random.randint(ikey, (B, S), 0, VOCAB, dtype=jnp.int32)
    attention_mask = jnp.array([[1] * S,
                                [1] * (S - 3) + [0] * 3], dtype=jnp.int32)
    token_type_ids = jnp.zeros((B, S), dtype=jnp.int32)

    logits = jax.block_until_ready(forward(input_ids, attention_mask, token_type_ids))

    ref = jax.block_until_ready(
        reference_forward(params, input_ids, attention_mask, token_type_ids))
    assert logits.shape == (B, NUM_LABELS)
    np.testing.assert_allclose(np.asarray(logits), np.asarray(ref),
                               rtol=1e-3, atol=1e-3)
    print("KERNEL_OK")
</pallas_src>

<mosaic_0001>
module attributes {stable_mosaic.version = 11 : i64} {
  func.func @model_kernel(%arg0: i32, %arg1: memref<1x8x32xf32, #tpu.memory_space<vmem>>, %arg2: memref<1x1x8xf32, #tpu.memory_space<vmem>>, %arg3: memref<12x33x16xf32, #tpu.memory_space<vmem>>, %arg4: memref<2x33x32xf32, #tpu.memory_space<vmem>>, %arg5: memref<2x33x64xf32, #tpu.memory_space<vmem>>, %arg6: memref<2x65x32xf32, #tpu.memory_space<vmem>>, %arg7: memref<10x32xf32, #tpu.memory_space<vmem>>, %arg8: memref<2x33x128xf32, #tpu.memory_space<vmem>>, %arg9: memref<1x8x128xf32, #tpu.memory_space<vmem>>) attributes {dimension_semantics = [#tpu.dimension_semantics<parallel>], iteration_bounds = array<i64: 2>, scalar_prefetch = 0 : i64, scratch_operands = 0 : i64, tpu.core_type = #tpu.core_type<tc>, window_params = [{transform_indices = @transform_0, window_bounds = array<i64: 1, 8, 32>}, {transform_indices = @transform_1, window_bounds = array<i64: 1, 1, 8>}, {pipeline_mode = #tpu.pipeline_mode<synchronous>, transform_indices = @transform_2, window_bounds = array<i64: 12, 33, 16>}, {pipeline_mode = #tpu.pipeline_mode<synchronous>, transform_indices = @transform_3, window_bounds = array<i64: 2, 33, 32>}, {pipeline_mode = #tpu.pipeline_mode<synchronous>, transform_indices = @transform_4, window_bounds = array<i64: 2, 33, 64>}, {pipeline_mode = #tpu.pipeline_mode<synchronous>, transform_indices = @transform_5, window_bounds = array<i64: 2, 65, 32>}, {pipeline_mode = #tpu.pipeline_mode<synchronous>, transform_indices = @transform_6, window_bounds = array<i64: 10, 32>}, {pipeline_mode = #tpu.pipeline_mode<synchronous>, transform_indices = @transform_7, window_bounds = array<i64: 2, 33, 128>}, {transform_indices = @transform_8, window_bounds = array<i64: 1, 8, 128>}]} {
    %c0 = arith.constant 0 : index
    %c0_0 = arith.constant 0 : index
    %c0_1 = arith.constant 0 : index
    %0 = vector.load %arg1[%c0, %c0_0, %c0_1] : memref<1x8x32xf32, #tpu.memory_space<vmem>>, vector<1x8x32xf32>
    %1 = vector.shape_cast %0 : vector<1x8x32xf32> to vector<8x32xf32>
    %c0_2 = arith.constant 0 : index
    %c0_3 = arith.constant 0 : index
    %2 = vector.load %arg7[%c0_2, %c0_3] : memref<10x32xf32, #tpu.memory_space<vmem>>, vector<1x32xf32>
    %c1 = arith.constant 1 : index
    %c0_4 = arith.constant 0 : index
    %3 = vector.load %arg7[%c1, %c0_4] : memref<10x32xf32, #tpu.memory_space<vmem>>, vector<1x32xf32>
    %cst = arith.constant dense<0.000000e+00> : vector<8xf32>
    %4 = vector.multi_reduction <add>, %1, %cst [1] : vector<8x32xf32> to vector<8xf32>
    %5 = vector.shape_cast %4 : vector<8xf32> to vector<8x1xf32>
    %cst_5 = arith.constant 3.200000e+01 : f32
    %6 = vector.broadcast %cst_5 : f32 to vector<8x1xf32>
    %7 = arith.divf %5, %6 : vector<8x1xf32>
    %8 = vector.broadcast %7 : vector<8x1xf32> to vector<8x32xf32>
    %9 = arith.subf %1, %8 : vector<8x32xf32>
    %10 = arith.mulf %9, %9 : vector<8x32xf32>
    %cst_6 = arith.constant dense<0.000000e+00> : vector<8xf32>
    %11 = vector.multi_reduction <add>, %10, %cst_6 [1] : vector<8x32xf32> to vector<8xf32>
    %12 = vector.shape_cast %11 : vector<8xf32> to vector<8x1xf32>
    %cst_7 = arith.constant 3.200000e+01 : f32
    %13 = vector.broadcast %cst_7 : f32 to vector<8x1xf32>
    %14 = arith.divf %12, %13 : vector<8x1xf32>
    %15 = vector.broadcast %7 : vector<8x1xf32> to vector<8x32xf32>
    %16 = arith.subf %1, %15 : vector<8x32xf32>
    %cst_8 = arith.constant 9.99999996E-13 : f32
    %17 = vector.broadcast %cst_8 : f32 to vector<8x1xf32>
    %18 = arith.addf %14, %17 : vector<8x1xf32>
    %19 = math.rsqrt %18 : vector<8x1xf32>
    %20 = vector.broadcast %19 : vector<8x1xf32> to vector<8x32xf32>
    %21 = arith.mulf %16, %20 : vector<8x32xf32>
    %22 = vector.broadcast %2 : vector<1x32xf32> to vector<8x32xf32>
    %23 = arith.mulf %21, %22 : vector<8x32xf32>
    %24 = vector.broadcast %3 : vector<1x32xf32> to vector<8x32xf32>
    %25 = arith.addf %23, %24 : vector<8x32xf32>
    %c0_9 = arith.constant 0 : index
    %c0_10 = arith.constant 0 : index
    %c0_11 = arith.constant 0 : index
    %26 = vector.load %arg2[%c0_9, %c0_10, %c0_11] : memref<1x1x8xf32, #tpu.memory_space<vmem>>, vector<1x1x8xf32>
    %27 = vector.shape_cast %26 : vector<1x1x8xf32> to vector<1x8xf32>
    %c0_12 = arith.constant 0 : index
    %c0_13 = arith.constant 0 : index
    %c0_14 = arith.constant 0 : index
    %28 = vector.load %arg3[%c0_12, %c0_13, %c0_14] : memref<12x33x16xf32, #tpu.memory_space<vmem>>, vector<1x32x16xf32>
    %29 = vector.shape_cast %28 : vector<1x32x16xf32> to vector<32x16xf32>
    %cst_15 = arith.constant dense<0.000000e+00> : vector<8x16xf32>
    %30 = tpu.matmul %25, %29, %cst_15 {dimension_numbers = #tpu.dot_dimension_numbers<[1], [0], [0], [1], [0, 0, 1, 1], [], []>} : vector<8x32xf32>, vector<32x16xf32>, vector<8x16xf32> -> vector<8x16xf32>
    %c0_16 = arith.constant 0 : index
    %c32 = arith.constant 32 : index
    %c0_17 = arith.constant 0 : index
    %31 = vector.load %arg3[%c0_16, %c32, %c0_17] : memref<12x33x16xf32, #tpu.memory_space<vmem>>, vector<1x1x16xf32>
    %32 = vector.shape_cast %31 : vector<1x1x16xf32> to vector<1x16xf32>
    %33 = vector.broadcast %32 : vector<1x16xf32> to vector<8x16xf32>
    %34 = arith.addf %30, %33 : vector<8x16xf32>
    %c1_18 = arith.constant 1 : index
    %c0_19 = arith.constant 0 : index
    %c0_20 = arith.constant 0 : index
    %35 = vector.load %arg3[%c1_18, %c0_19, %c0_20] : memref<12x33x16xf32, #tpu.memory_space<vmem>>, vector<1x32x16xf32>
    %36 = vector.shape_cast %35 : vector<1x32x16xf32> to vector<32x16xf32>
    %cst_21 = arith.constant dense<0.000000e+00> : vector<8x16xf32>
    %37 = tpu.matmul %25, %36, %cst_21 {dimension_numbers = #tpu.dot_dimension_numbers<[1], [0], [0], [1], [0, 0, 1, 1], [], []>} : vector<8x32xf32>, vector<32x16xf32>, vector<8x16xf32> -> vector<8x16xf32>
    %c1_22 = arith.constant 1 : index
    %c32_23 = arith.constant 32 : index
    %c0_24 = arith.constant 0 : index
    %38 = vector.load %arg3[%c1_22, %c32_23, %c0_24] : memref<12x33x16xf32, #tpu.memory_space<vmem>>, vector<1x1x16xf32>
    %39 = vector.shape_cast %38 : vector<1x1x16xf32> to vector<1x16xf32>
    %40 = vector.broadcast %39 : vector<1x16xf32> to vector<8x16xf32>
    %41 = arith.addf %37, %40 : vector<8x16xf32>
    %c2 = arith.constant 2 : index
    %c0_25 = arith.constant 0 : index
    %c0_26 = arith.constant 0 : index
    %42 = vector.load %arg3[%c2, %c0_25, %c0_26] : memref<12x33x16xf32, #tpu.memory_space<vmem>>, vector<1x32x16xf32>
    %43 = vector.shape_cast %42 : vector<1x32x16xf32> to vector<32x16xf32>
    %cst_27 = arith.constant dense<0.000000e+00> : vector<8x16xf32>
    %44 = tpu.matmul %25, %43, %cst_27 {dimension_numbers = #tpu.dot_dimension_numbers<[1], [0], [0], [1], [0, 0, 1, 1], [], []>} : vector<8x32xf32>, vector<32x16xf32>, vector<8x16xf32> -> vector<8x16xf32>
    %c2_28 = arith.constant 2 : index
    %c32_29 = arith.constant 32 : index
    %c0_30 = arith.constant 0 : index
    %45 = vector.load %arg3[%c2_28, %c32_29, %c0_30] : memref<12x33x16xf32, #tpu.memory_space<vmem>>, vector<1x1x16xf32>
    %46 = vector.shape_cast %45 : vector<1x1x16xf32> to vector<1x16xf32>
    %47 = vector.broadcast %46 : vector<1x16xf32> to vector<8x16xf32>
    %48 = arith.addf %44, %47 : vector<8x16xf32>
    "tpu.trace_start"() <{level = 10 : i32, message = "qd,kd->qk"}> : () -> ()
    %cst_31 = arith.constant dense<0.000000e+00> : vector<8x8xf32>
    %49 = tpu.matmul %34, %41, %cst_31 {dimension_numbers = #tpu.dot_dimension_numbers<[1], [1], [0], [0], [0, 0, 1, 0], [], []>} : vector<8x16xf32>, vector<8x16xf32>, vector<8x8xf32> -> vector<8x8xf32>
    "tpu.trace_stop"() : () -> ()
    %cst_32 = arith.constant 2.500000e-01 : f32
    %50 = vector.broadcast %cst_32 : f32 to vector<8x8xf32>
    %51 = arith.mulf %49, %50 : vector<8x8xf32>
    %52 = vector.broadcast %27 : vector<1x8xf32> to vector<8x8xf32>
    %53 = arith.addf %51, %52 : vector<8x8xf32>
    %cst_33 = arith.constant dense<0xFF800000> : vector<8xf32>
    %54 = vector.multi_reduction <maximumf>, %53, %cst_33 [1] : vector<8x8xf32> to vector<8xf32>
    %55 = vector.shape_cast %54 : vector<8xf32> to vector<8x1xf32>
    %56 = vector.broadcast %55 : vector<8x1xf32> to vector<8x8xf32>
    %57 = arith.subf %53, %56 : vector<8x8xf32>
    %58 = math.exp %57 : vector<8x8xf32>
    %cst_34 = arith.constant dense<0.000000e+00> : vector<8xf32>
    %59 = vector.multi_reduction <add>, %58, %cst_34 [1] : vector<8x8xf32> to vector<8xf32>
    %60 = vector.shape_cast %59 : vector<8xf32> to vector<8x1xf32>
    %61 = tpu.reciprocal %60 {approx = true} : vector<8x1xf32> -> vector<8x1xf32>
    %62 = vector.broadcast %61 : vector<8x1xf32> to vector<8x8xf32>
    %63 = arith.mulf %58, %62 : vector<8x8xf32>
    %cst_35 = arith.constant dense<0.000000e+00> : vector<8x16xf32>
    %64 = tpu.matmul %63, %48, %cst_35 {dimension_numbers = #tpu.dot_dimension_numbers<[1], [0], [0], [1], [0, 0, 1, 1], [], []>} : vector<8x8xf32>, vector<8x16xf32>, vector<8x16xf32> -> vector<8x16xf32>
    %c3 = arith.constant 3 : index
    %c0_36 = arith.constant 0 : index
    %c0_37 = arith.constant 0 : index
    %65 = vector.load %arg3[%c3, %c0_36, %c0_37] : memref<12x33x16xf32, #tpu.memory_space<vmem>>, vector<1x32x16xf32>
    %66 = vector.shape_cast %65 : vector<1x32x16xf32> to vector<32x16xf32>
    %cst_38 = arith.constant dense<0.000000e+00> : vector<8x16xf32>
    %67 = tpu.matmul %25, %66, %cst_38 {dimension_numbers = #tpu.dot_dimension_numbers<[1], [0], [0], [1], [0, 0, 1, 1], [], []>} : vector<8x32xf32>, vector<32x16xf32>, vector<8x16xf32> -> vector<8x16xf32>
    %c3_39 = arith.constant 3 : index
    %c32_40 = arith.constant 32 : index
    %c0_41 = arith.constant 0 : index
    %68 = vector.load %arg3[%c3_39, %c32_40, %c0_41] : memref<12x33x16xf32, #tpu.memory_space<vmem>>, vector<1x1x16xf32>
    %69 = vector.shape_cast %68 : vector<1x1x16xf32> to vector<1x16xf32>
    %70 = vector.broadcast %69 : vector<1x16xf32> to vector<8x16xf32>
    %71 = arith.addf %67, %70 : vector<8x16xf32>
    %c4 = arith.constant 4 : index
    %c0_42 = arith.constant 0 : index
    %c0_43 = arith.constant 0 : index
    %72 = vector.load %arg3[%c4, %c0_42, %c0_43] : memref<12x33x16xf32, #tpu.memory_space<vmem>>, vector<1x32x16xf32>
    %73 = vector.shape_cast %72 : vector<1x32x16xf32> to vector<32x16xf32>
    %cst_44 = arith.constant dense<0.000000e+00> : vector<8x16xf32>
    %74 = tpu.matmul %25, %73, %cst_44 {dimension_numbers = #tpu.dot_dimension_numbers<[1], [0], [0], [1], [0, 0, 1, 1], [], []>} : vector<8x32xf32>, vector<32x16xf32>, vector<8x16xf32> -> vector<8x16xf32>
    %c4_45 = arith.constant 4 : index
    %c32_46 = arith.constant 32 : index
    %c0_47 = arith.constant 0 : index
    %75 = vector.load %arg3[%c4_45, %c32_46, %c0_47] : memref<12x33x16xf32, #tpu.memory_space<vmem>>, vector<1x1x16xf32>
    %76 = vector.shape_cast %75 : vector<1x1x16xf32> to vector<1x16xf32>
    %77 = vector.broadcast %76 : vector<1x16xf32> to vector<8x16xf32>
    %78 = arith.addf %74, %77 : vector<8x16xf32>
    %c5 = arith.constant 5 : index
    %c0_48 = arith.constant 0 : index
    %c0_49 = arith.constant 0 : index
    %79 = vector.load %arg3[%c5, %c0_48, %c0_49] : memref<12x33x16xf32, #tpu.memory_space<vmem>>, vector<1x32x16xf32>
    %80 = vector.shape_cast %79 : vector<1x32x16xf32> to vector<32x16xf32>
    %cst_50 = arith.constant dense<0.000000e+00> : vector<8x16xf32>
    %81 = tpu.matmul %25, %80, %cst_50 {dimension_numbers = #tpu.dot_dimension_numbers<[1], [0], [0], [1], [0, 0, 1, 1], [], []>} : vector<8x32xf32>, vector<32x16xf32>, vector<8x16xf32> -> vector<8x16xf32>
    %c5_51 = arith.constant 5 : index
    %c32_52 = arith.constant 32 : index
    %c0_53 = arith.constant 0 : index
    %82 = vector.load %arg3[%c5_51, %c32_52, %c0_53] : memref<12x33x16xf32, #tpu.memory_space<vmem>>, vector<1x1x16xf32>
    %83 = vector.shape_cast %82 : vector<1x1x16xf32> to vector<1x16xf32>
    %84 = vector.broadcast %83 : vector<1x16xf32> to vector<8x16xf32>
    %85 = arith.addf %81, %84 : vector<8x16xf32>
    "tpu.trace_start"() <{level = 10 : i32, message = "qd,kd->qk"}> : () -> ()
    %cst_54 = arith.constant dense<0.000000e+00> : vector<8x8xf32>
    %86 = tpu.matmul %71, %78, %cst_54 {dimension_numbers = #tpu.dot_dimension_numbers<[1], [1], [0], [0], [0, 0, 1, 0], [], []>} : vector<8x16xf32>, vector<8x16xf32>, vector<8x8xf32> -> vector<8x8xf32>
    "tpu.trace_stop"() : () -> ()
    %cst_55 = arith.constant 2.500000e-01 : f32
    %87 = vector.broadcast %cst_55 : f32 to vector<8x8xf32>
    %88 = arith.mulf %86, %87 : vector<8x8xf32>
    %89 = vector.broadcast %27 : vector<1x8xf32> to vector<8x8xf32>
    %90 = arith.addf %88, %89 : vector<8x8xf32>
    %cst_56 = arith.constant dense<0xFF800000> : vector<8xf32>
    %91 = vector.multi_reduction <maximumf>, %90, %cst_56 [1] : vector<8x8xf32> to vector<8xf32>
    %92 = vector.shape_cast %91 : vector<8xf32> to vector<8x1xf32>
    %93 = vector.broadcast %92 : vector<8x1xf32> to vector<8x8xf32>
    %94 = arith.subf %90, %93 : vector<8x8xf32>
    %95 = math.exp %94 : vector<8x8xf32>
    %cst_57 = arith.constant dense<0.000000e+00> : vector<8xf32>
    %96 = vector.multi_reduction <add>, %95, %cst_57 [1] : vector<8x8xf32> to vector<8xf32>
    %97 = vector.shape_cast %96 : vector<8xf32> to vector<8x1xf32>
    %98 = tpu.reciprocal %97 {approx = true} : vector<8x1xf32> -> vector<8x1xf32>
    %99 = vector.broadcast %98 : vector<8x1xf32> to vector<8x8xf32>
    %100 = arith.mulf %95, %99 : vector<8x8xf32>
    %cst_58 = arith.constant dense<0.000000e+00> : vector<8x16xf32>
    %101 = tpu.matmul %100, %85, %cst_58 {dimension_numbers = #tpu.dot_dimension_numbers<[1], [0], [0], [1], [0, 0, 1, 1], [], []>} : vector<8x8xf32>, vector<8x16xf32>, vector<8x16xf32> -> vector<8x16xf32>
    %102 = tpu.concatenate %64, %101 in 1 : vector<8x16xf32>, vector<8x16xf32> -> vector<8x32xf32>
    %c0_59 = arith.constant 0 : index
    %c0_60 = arith.constant 0 : index
    %c0_61 = arith.constant 0 : index
    %103 = vector.load %arg4[%c0_59, %c0_60, %c0_61] : memref<2x33x32xf32, #tpu.memory_space<vmem>>, vector<1x32x32xf32>
    %104 = vector.shape_cast %103 : vector<1x32x32xf32> to vector<32x32xf32>
    %cst_62 = arith.constant dense<0.000000e+00> : vector<8x32xf32>
    %105 = tpu.matmul %102, %104, %cst_62 {dimension_numbers = #tpu.dot_dimension_numbers<[1], [0], [0], [1], [0, 0, 1, 1], [], []>} : vector<8x32xf32>, vector<32x32xf32>, vector<8x32xf32> -> vector<8x32xf32>
    %c0_63 = arith.constant 0 : index
    %c32_64 = arith.constant 32 : index
    %c0_65 = arith.constant 0 : index
    %106 = vector.load %arg4[%c0_63, %c32_64, %c0_65] : memref<2x33x32xf32, #tpu.memory_space<vmem>>, vector<1x1x32xf32>
    %107 = vector.shape_cast %106 : vector<1x1x32xf32> to vector<1x32xf32>
    %108 = vector.broadcast %107 : vector<1x32xf32> to vector<8x32xf32>
    %109 = arith.addf %105, %108 : vector<8x32xf32>
    %110 = arith.addf %25, %109 : vector<8x32xf32>
    %c2_66 = arith.constant 2 : index
    %c0_67 = arith.constant 0 : index
    %111 = vector.load %arg7[%c2_66, %c0_67] : memref<10x32xf32, #tpu.memory_space<vmem>>, vector<1x32xf32>
    %c3_68 = arith.constant 3 : index
    %c0_69 = arith.constant 0 : index
    %112 = vector.load %arg7[%c3_68, %c0_69] : memref<10x32xf32, #tpu.memory_space<vmem>>, vector<1x32xf32>
    %cst_70 = arith.constant dense<0.000000e+00> : vector<8xf32>
    %113 = vector.multi_reduction <add>, %110, %cst_70 [1] : vector<8x32xf32> to vector<8xf32>
    %114 = vector.shape_cast %113 : vector<8xf32> to vector<8x1xf32>
    %cst_71 = arith.constant 3.200000e+01 : f32
    %115 = vector.broadcast %cst_71 : f32 to vector<8x1xf32>
    %116 = arith.divf %114, %115 : vector<8x1xf32>
    %117 = vector.broadcast %116 : vector<8x1xf32> to vector<8x32xf32>
    %118 = arith.subf %110, %117 : vector<8x32xf32>
    %119 = arith.mulf %118, %118 : vector<8x32xf32>
    %cst_72 = arith.constant dense<0.000000e+00> : vector<8xf32>
    %120 = vector.multi_reduction <add>, %119, %cst_72 [1] : vector<8x32xf32> to vector<8xf32>
    %121 = vector.shape_cast %120 : vector<8xf32> to vector<8x1xf32>
    %cst_73 = arith.constant 3.200000e+01 : f32
    %122 = vector.broadcast %cst_73 : f32 to vector<8x1xf32>
    %123 = arith.divf %121, %122 : vector<8x1xf32>
    %124 = vector.broadcast %116 : vector<8x1xf32> to vector<8x32xf32>
    %125 = arith.subf %110, %124 : vector<8x32xf32>
    %cst_74 = arith.constant 9.99999996E-13 : f32
    %126 = vector.broadcast %cst_74 : f32 to vector<8x1xf32>
    %127 = arith.addf %123, %126 : vector<8x1xf32>
    %128 = math.rsqrt %127 : vector<8x1xf32>
    %129 = vector.broadcast %128 : vector<8x1xf32> to vector<8x32xf32>
    %130 = arith.mulf %125, %129 : vector<8x32xf32>
    %131 = vector.broadcast %111 : vector<1x32xf32> to vector<8x32xf32>
    %132 = arith.mulf %130, %131 : vector<8x32xf32>
    %133 = vector.broadcast %112 : vector<1x32xf32> to vector<8x32xf32>
    %134 = arith.addf %132, %133 : vector<8x32xf32>
    %c0_75 = arith.constant 0 : index
    %c0_76 = arith.constant 0 : index
    %c0_77 = arith.constant 0 : index
    %135 = vector.load %arg5[%c0_75, %c0_76, %c0_77] : memref<2x33x64xf32, #tpu.memory_space<vmem>>, vector<1x32x64xf32>
    %136 = vector.shape_cast %135 : vector<1x32x64xf32> to vector<32x64xf32>
    %cst_78 = arith.constant dense<0.000000e+00> : vector<8x64xf32>
    %137 = tpu.matmul %134, %136, %cst_78 {dimension_numbers = #tpu.dot_dimension_numbers<[1], [0], [0], [1], [0, 0, 1, 1], [], []>} : vector<8x32xf32>, vector<32x64xf32>, vector<8x64xf32> -> vector<8x64xf32>
    %c0_79 = arith.constant 0 : index
    %c32_80 = arith.constant 32 : index
    %c0_81 = arith.constant 0 : index
    %138 = vector.load %arg5[%c0_79, %c32_80, %c0_81] : memref<2x33x64xf32, #tpu.memory_space<vmem>>, vector<1x1x64xf32>
    %139 = vector.shape_cast %138 : vector<1x1x64xf32> to vector<1x64xf32>
    %140 = vector.broadcast %139 : vector<1x64xf32> to vector<8x64xf32>
    %141 = arith.addf %137, %140 : vector<8x64xf32>
    %cst_82 = arith.constant 5.000000e-01 : f32
    %142 = vector.broadcast %cst_82 : f32 to vector<8x64xf32>
    %143 = arith.mulf %142, %141 : vector<8x64xf32>
    %cst_83 = arith.constant 4.471500e-02 : f32
    %144 = vector.broadcast %cst_83 : f32 to vector<8x64xf32>
    %145 = arith.mulf %144, %141 : vector<8x64xf32>
    %146 = arith.mulf %145, %141 : vector<8x64xf32>
    %147 = arith.mulf %146, %141 : vector<8x64xf32>
    %148 = arith.addf %141, %147 : vector<8x64xf32>
    %cst_84 = arith.constant 0.797884583 : f32
    %149 = vector.broadcast %cst_84 : f32 to vector<8x64xf32>
    %150 = arith.mulf %149, %148 : vector<8x64xf32>
    %151 = math.tanh %150 : vector<8x64xf32>
    %cst_85 = arith.constant 1.000000e+00 : f32
    %152 = vector.broadcast %cst_85 : f32 to vector<8x64xf32>
    %153 = arith.addf %152, %151 : vector<8x64xf32>
    %154 = arith.mulf %143, %153 : vector<8x64xf32>
    %c0_86 = arith.constant 0 : index
    %c0_87 = arith.constant 0 : index
    %c0_88 = arith.constant 0 : index
    %155 = vector.load %arg6[%c0_86, %c0_87, %c0_88] : memref<2x65x32xf32, #tpu.memory_space<vmem>>, vector<1x64x32xf32>
    %156 = vector.shape_cast %155 : vector<1x64x32xf32> to vector<64x32xf32>
    %cst_89 = arith.constant dense<0.000000e+00> : vector<8x32xf32>
    %157 = tpu.matmul %154, %156, %cst_89 {dimension_numbers = #tpu.dot_dimension_numbers<[1], [0], [0], [1], [0, 0, 1, 1], [], []>} : vector<8x64xf32>, vector<64x32xf32>, vector<8x32xf32> -> vector<8x32xf32>
    %c0_90 = arith.constant 0 : index
    %c64 = arith.constant 64 : index
    %c0_91 = arith.constant 0 : index
    %158 = vector.load %arg6[%c0_90, %c64, %c0_91] : memref<2x65x32xf32, #tpu.memory_space<vmem>>, vector<1x1x32xf32>
    %159 = vector.shape_cast %158 : vector<1x1x32xf32> to vector<1x32xf32>
    %160 = vector.broadcast %159 : vector<1x32xf32> to vector<8x32xf32>
    %161 = arith.addf %157, %160 : vector<8x32xf32>
    %162 = arith.addf %134, %161 : vector<8x32xf32>
    %c4_92 = arith.constant 4 : index
    %c0_93 = arith.constant 0 : index
    %163 = vector.load %arg7[%c4_92, %c0_93] : memref<10x32xf32, #tpu.memory_space<vmem>>, vector<1x32xf32>
    %c5_94 = arith.constant 5 : index
    %c0_95 = arith.constant 0 : index
    %164 = vector.load %arg7[%c5_94, %c0_95] : memref<10x32xf32, #tpu.memory_space<vmem>>, vector<1x32xf32>
    %cst_96 = arith.constant dense<0.000000e+00> : vector<8xf32>
    %165 = vector.multi_reduction <add>, %162, %cst_96 [1] : vector<8x32xf32> to vector<8xf32>
    %166 = vector.shape_cast %165 : vector<8xf32> to vector<8x1xf32>
    %cst_97 = arith.constant 3.200000e+01 : f32
    %167 = vector.broadcast %cst_97 : f32 to vector<8x1xf32>
    %168 = arith.divf %166, %167 : vector<8x1xf32>
    %169 = vector.broadcast %168 : vector<8x1xf32> to vector<8x32xf32>
    %170 = arith.subf %162, %169 : vector<8x32xf32>
    %171 = arith.mulf %170, %170 : vector<8x32xf32>
    %cst_98 = arith.constant dense<0.000000e+00> : vector<8xf32>
    %172 = vector.multi_reduction <add>, %171, %cst_98 [1] : vector<8x32xf32> to vector<8xf32>
    %173 = vector.shape_cast %172 : vector<8xf32> to vector<8x1xf32>
    %cst_99 = arith.constant 3.200000e+01 : f32
    %174 = vector.broadcast %cst_99 : f32 to vector<8x1xf32>
    %175 = arith.divf %173, %174 : vector<8x1xf32>
    %176 = vector.broadcast %168 : vector<8x1xf32> to vector<8x32xf32>
    %177 = arith.subf %162, %176 : vector<8x32xf32>
    %cst_100 = arith.constant 9.99999996E-13 : f32
    %178 = vector.broadcast %cst_100 : f32 to vector<8x1xf32>
    %179 = arith.addf %175, %178 : vector<8x1xf32>
    %180 = math.rsqrt %179 : vector<8x1xf32>
    %181 = vector.broadcast %180 : vector<8x1xf32> to vector<8x32xf32>
    %182 = arith.mulf %177, %181 : vector<8x32xf32>
    %183 = vector.broadcast %163 : vector<1x32xf32> to vector<8x32xf32>
    %184 = arith.mulf %182, %183 : vector<8x32xf32>
    %185 = vector.broadcast %164 : vector<1x32xf32> to vector<8x32xf32>
    %186 = arith.addf %184, %185 : vector<8x32xf32>
    %c6 = arith.constant 6 : index
    %c0_101 = arith.constant 0 : index
    %c0_102 = arith.constant 0 : index
    %187 = vector.load %arg3[%c6, %c0_101, %c0_102] : memref<12x33x16xf32, #tpu.memory_space<vmem>>, vector<1x32x16xf32>
    %188 = vector.shape_cast %187 : vector<1x32x16xf32> to vector<32x16xf32>
    %cst_103 = arith.constant dense<0.000000e+00> : vector<8x16xf32>
    %189 = tpu.matmul %186, %188, %cst_103 {dimension_numbers = #tpu.dot_dimension_numbers<[1], [0], [0], [1], [0, 0, 1, 1], [], []>} : vector<8x32xf32>, vector<32x16xf32>, vector<8x16xf32> -> vector<8x16xf32>
    %c6_104 = arith.constant 6 : index
    %c32_105 = arith.constant 32 : index
    %c0_106 = arith.constant 0 : index
    %190 = vector.load %arg3[%c6_104, %c32_105, %c0_106] : memref<12x33x16xf32, #tpu.memory_space<vmem>>, vector<1x1x16xf32>
    %191 = vector.shape_cast %190 : vector<1x1x16xf32> to vector<1x16xf32>
    %192 = vector.broadcast %191 : vector<1x16xf32> to vector<8x16xf32>
    %193 = arith.addf %189, %192 : vector<8x16xf32>
    %c7 = arith.constant 7 : index
    %c0_107 = arith.constant 0 : index
    %c0_108 = arith.constant 0 : index
    %194 = vector.load %arg3[%c7, %c0_107, %c0_108] : memref<12x33x16xf32, #tpu.memory_space<vmem>>, vector<1x32x16xf32>
    %195 = vector.shape_cast %194 : vector<1x32x16xf32> to vector<32x16xf32>
    %cst_109 = arith.constant dense<0.000000e+00> : vector<8x16xf32>
    %196 = tpu.matmul %186, %195, %cst_109 {dimension_numbers = #tpu.dot_dimension_numbers<[1], [0], [0], [1], [0, 0, 1, 1], [], []>} : vector<8x32xf32>, vector<32x16xf32>, vector<8x16xf32> -> vector<8x16xf32>
    %c7_110 = arith.constant 7 : index
    %c32_111 = arith.constant 32 : index
    %c0_112 = arith.constant 0 : index
    %197 = vector.load %arg3[%c7_110, %c32_111, %c0_112] : memref<12x33x16xf32, #tpu.memory_space<vmem>>, vector<1x1x16xf32>
    %198 = vector.shape_cast %197 : vector<1x1x16xf32> to vector<1x16xf32>
    %199 = vector.broadcast %198 : vector<1x16xf32> to vector<8x16xf32>
    %200 = arith.addf %196, %199 : vector<8x16xf32>
    %c8 = arith.constant 8 : index
    %c0_113 = arith.constant 0 : index
    %c0_114 = arith.constant 0 : index
    %201 = vector.load %arg3[%c8, %c0_113, %c0_114] : memref<12x33x16xf32, #tpu.memory_space<vmem>>, vector<1x32x16xf32>
    %202 = vector.shape_cast %201 : vector<1x32x16xf32> to vector<32x16xf32>
    %cst_115 = arith.constant dense<0.000000e+00> : vector<8x16xf32>
    %203 = tpu.matmul %186, %202, %cst_115 {dimension_numbers = #tpu.dot_dimension_numbers<[1], [0], [0], [1], [0, 0, 1, 1], [], []>} : vector<8x32xf32>, vector<32x16xf32>, vector<8x16xf32> -> vector<8x16xf32>
    %c8_116 = arith.constant 8 : index
    %c32_117 = arith.constant 32 : index
    %c0_118 = arith.constant 0 : index
    %204 = vector.load %arg3[%c8_116, %c32_117, %c0_118] : memref<12x33x16xf32, #tpu.memory_space<vmem>>, vector<1x1x16xf32>
    %205 = vector.shape_cast %204 : vector<1x1x16xf32> to vector<1x16xf32>
    %206 = vector.broadcast %205 : vector<1x16xf32> to vector<8x16xf32>
    %207 = arith.addf %203, %206 : vector<8x16xf32>
    "tpu.trace_start"() <{level = 10 : i32, message = "qd,kd->qk"}> : () -> ()
    %cst_119 = arith.constant dense<0.000000e+00> : vector<8x8xf32>
    %208 = tpu.matmul %193, %200, %cst_119 {dimension_numbers = #tpu.dot_dimension_numbers<[1], [1], [0], [0], [0, 0, 1, 0], [], []>} : vector<8x16xf32>, vector<8x16xf32>, vector<8x8xf32> -> vector<8x8xf32>
    "tpu.trace_stop"() : () -> ()
    %cst_120 = arith.constant 2.500000e-01 : f32
    %209 = vector.broadcast %cst_120 : f32 to vector<8x8xf32>
    %210 = arith.mulf %208, %209 : vector<8x8xf32>
    %211 = vector.broadcast %27 : vector<1x8xf32> to vector<8x8xf32>
    %212 = arith.addf %210, %211 : vector<8x8xf32>
    %cst_121 = arith.constant dense<0xFF800000> : vector<8xf32>
    %213 = vector.multi_reduction <maximumf>, %212, %cst_121 [1] : vector<8x8xf32> to vector<8xf32>
    %214 = vector.shape_cast %213 : vector<8xf32> to vector<8x1xf32>
    %215 = vector.broadcast %214 : vector<8x1xf32> to vector<8x8xf32>
    %216 = arith.subf %212, %215 : vector<8x8xf32>
    %217 = math.exp %216 : vector<8x8xf32>
    %cst_122 = arith.constant dense<0.000000e+00> : vector<8xf32>
    %218 = vector.multi_reduction <add>, %217, %cst_122 [1] : vector<8x8xf32> to vector<8xf32>
    %219 = vector.shape_cast %218 : vector<8xf32> to vector<8x1xf32>
    %220 = tpu.reciprocal %219 {approx = true} : vector<8x1xf32> -> vector<8x1xf32>
    %221 = vector.broadcast %220 : vector<8x1xf32> to vector<8x8xf32>
    %222 = arith.mulf %217, %221 : vector<8x8xf32>
    %cst_123 = arith.constant dense<0.000000e+00> : vector<8x16xf32>
    %223 = tpu.matmul %222, %207, %cst_123 {dimension_numbers = #tpu.dot_dimension_numbers<[1], [0], [0], [1], [0, 0, 1, 1], [], []>} : vector<8x8xf32>, vector<8x16xf32>, vector<8x16xf32> -> vector<8x16xf32>
    %c9 = arith.constant 9 : index
    %c0_124 = arith.constant 0 : index
    %c0_125 = arith.constant 0 : index
    %224 = vector.load %arg3[%c9, %c0_124, %c0_125] : memref<12x33x16xf32, #tpu.memory_space<vmem>>, vector<1x32x16xf32>
    %225 = vector.shape_cast %224 : vector<1x32x16xf32> to vector<32x16xf32>
    %cst_126 = arith.constant dense<0.000000e+00> : vector<8x16xf32>
    %226 = tpu.matmul %186, %225, %cst_126 {dimension_numbers = #tpu.dot_dimension_numbers<[1], [0], [0], [1], [0, 0, 1, 1], [], []>} : vector<8x32xf32>, vector<32x16xf32>, vector<8x16xf32> -> vector<8x16xf32>
    %c9_127 = arith.constant 9 : index
    %c32_128 = arith.constant 32 : index
    %c0_129 = arith.constant 0 : index
    %227 = vector.load %arg3[%c9_127, %c32_128, %c0_129] : memref<12x33x16xf32, #tpu.memory_space<vmem>>, vector<1x1x16xf32>
    %228 = vector.shape_cast %227 : vector<1x1x16xf32> to vector<1x16xf32>
    %229 = vector.broadcast %228 : vector<1x16xf32> to vector<8x16xf32>
    %230 = arith.addf %226, %229 : vector<8x16xf32>
    %c10 = arith.constant 10 : index
    %c0_130 = arith.constant 0 : index
    %c0_131 = arith.constant 0 : index
    %231 = vector.load %arg3[%c10, %c0_130, %c0_131] : memref<12x33x16xf32, #tpu.memory_space<vmem>>, vector<1x32x16xf32>
    %232 = vector.shape_cast %231 : vector<1x32x16xf32> to vector<32x16xf32>
    %cst_132 = arith.constant dense<0.000000e+00> : vector<8x16xf32>
    %233 = tpu.matmul %186, %232, %cst_132 {dimension_numbers = #tpu.dot_dimension_numbers<[1], [0], [0], [1], [0, 0, 1, 1], [], []>} : vector<8x32xf32>, vector<32x16xf32>, vector<8x16xf32> -> vector<8x16xf32>
    %c10_133 = arith.constant 10 : index
    %c32_134 = arith.constant 32 : index
    %c0_135 = arith.constant 0 : index
    %234 = vector.load %arg3[%c10_133, %c32_134, %c0_135] : memref<12x33x16xf32, #tpu.memory_space<vmem>>, vector<1x1x16xf32>
    %235 = vector.shape_cast %234 : vector<1x1x16xf32> to vector<1x16xf32>
    %236 = vector.broadcast %235 : vector<1x16xf32> to vector<8x16xf32>
    %237 = arith.addf %233, %236 : vector<8x16xf32>
    %c11 = arith.constant 11 : index
    %c0_136 = arith.constant 0 : index
    %c0_137 = arith.constant 0 : index
    %238 = vector.load %arg3[%c11, %c0_136, %c0_137] : memref<12x33x16xf32, #tpu.memory_space<vmem>>, vector<1x32x16xf32>
    %239 = vector.shape_cast %238 : vector<1x32x16xf32> to vector<32x16xf32>
    %cst_138 = arith.constant dense<0.000000e+00> : vector<8x16xf32>
    %240 = tpu.matmul %186, %239, %cst_138 {dimension_numbers = #tpu.dot_dimension_numbers<[1], [0], [0], [1], [0, 0, 1, 1], [], []>} : vector<8x32xf32>, vector<32x16xf32>, vector<8x16xf32> -> vector<8x16xf32>
    %c11_139 = arith.constant 11 : index
    %c32_140 = arith.constant 32 : index
    %c0_141 = arith.constant 0 : index
    %241 = vector.load %arg3[%c11_139, %c32_140, %c0_141] : memref<12x33x16xf32, #tpu.memory_space<vmem>>, vector<1x1x16xf32>
    %242 = vector.shape_cast %241 : vector<1x1x16xf32> to vector<1x16xf32>
    %243 = vector.broadcast %242 : vector<1x16xf32> to vector<8x16xf32>
    %244 = arith.addf %240, %243 : vector<8x16xf32>
    "tpu.trace_start"() <{level = 10 : i32, message = "qd,kd->qk"}> : () -> ()
    %cst_142 = arith.constant dense<0.000000e+00> : vector<8x8xf32>
    %245 = tpu.matmul %230, %237, %cst_142 {dimension_numbers = #tpu.dot_dimension_numbers<[1], [1], [0], [0], [0, 0, 1, 0], [], []>} : vector<8x16xf32>, vector<8x16xf32>, vector<8x8xf32> -> vector<8x8xf32>
    "tpu.trace_stop"() : () -> ()
    %cst_143 = arith.constant 2.500000e-01 : f32
    %246 = vector.broadcast %cst_143 : f32 to vector<8x8xf32>
    %247 = arith.mulf %245, %246 : vector<8x8xf32>
    %248 = vector.broadcast %27 : vector<1x8xf32> to vector<8x8xf32>
    %249 = arith.addf %247, %248 : vector<8x8xf32>
    %cst_144 = arith.constant dense<0xFF800000> : vector<8xf32>
    %250 = vector.multi_reduction <maximumf>, %249, %cst_144 [1] : vector<8x8xf32> to vector<8xf32>
    %251 = vector.shape_cast %250 : vector<8xf32> to vector<8x1xf32>
    %252 = vector.broadcast %251 : vector<8x1xf32> to vector<8x8xf32>
    %253 = arith.subf %249, %252 : vector<8x8xf32>
    %254 = math.exp %253 : vector<8x8xf32>
    %cst_145 = arith.constant dense<0.000000e+00> : vector<8xf32>
    %255 = vector.multi_reduction <add>, %254, %cst_145 [1] : vector<8x8xf32> to vector<8xf32>
    %256 = vector.shape_cast %255 : vector<8xf32> to vector<8x1xf32>
    %257 = tpu.reciprocal %256 {approx = true} : vector<8x1xf32> -> vector<8x1xf32>
    %258 = vector.broadcast %257 : vector<8x1xf32> to vector<8x8xf32>
    %259 = arith.mulf %254, %258 : vector<8x8xf32>
    %cst_146 = arith.constant dense<0.000000e+00> : vector<8x16xf32>
    %260 = tpu.matmul %259, %244, %cst_146 {dimension_numbers = #tpu.dot_dimension_numbers<[1], [0], [0], [1], [0, 0, 1, 1], [], []>} : vector<8x8xf32>, vector<8x16xf32>, vector<8x16xf32> -> vector<8x16xf32>
    %261 = tpu.concatenate %223, %260 in 1 : vector<8x16xf32>, vector<8x16xf32> -> vector<8x32xf32>
    %c1_147 = arith.constant 1 : index
    %c0_148 = arith.constant 0 : index
    %c0_149 = arith.constant 0 : index
    %262 = vector.load %arg4[%c1_147, %c0_148, %c0_149] : memref<2x33x32xf32, #tpu.memory_space<vmem>>, vector<1x32x32xf32>
    %263 = vector.shape_cast %262 : vector<1x32x32xf32> to vector<32x32xf32>
    %cst_150 = arith.constant dense<0.000000e+00> : vector<8x32xf32>
    %264 = tpu.matmul %261, %263, %cst_150 {dimension_numbers = #tpu.dot_dimension_numbers<[1], [0], [0], [1], [0, 0, 1, 1], [], []>} : vector<8x32xf32>, vector<32x32xf32>, vector<8x32xf32> -> vector<8x32xf32>
    %c1_151 = arith.constant 1 : index
    %c32_152 = arith.constant 32 : index
    %c0_153 = arith.constant 0 : index
    %265 = vector.load %arg4[%c1_151, %c32_152, %c0_153] : memref<2x33x32xf32, #tpu.memory_space<vmem>>, vector<1x1x32xf32>
    %266 = vector.shape_cast %265 : vector<1x1x32xf32> to vector<1x32xf32>
    %267 = vector.broadcast %266 : vector<1x32xf32> to vector<8x32xf32>
    %268 = arith.addf %264, %267 : vector<8x32xf32>
    %269 = arith.addf %186, %268 : vector<8x32xf32>
    %c6_154 = arith.constant 6 : index
    %c0_155 = arith.constant 0 : index
    %270 = vector.load %arg7[%c6_154, %c0_155] : memref<10x32xf32, #tpu.memory_space<vmem>>, vector<1x32xf32>
    %c7_156 = arith.constant 7 : index
    %c0_157 = arith.constant 0 : index
    %271 = vector.load %arg7[%c7_156, %c0_157] : memref<10x32xf32, #tpu.memory_space<vmem>>, vector<1x32xf32>
    %cst_158 = arith.constant dense<0.000000e+00> : vector<8xf32>
    %272 = vector.multi_reduction <add>, %269, %cst_158 [1] : vector<8x32xf32> to vector<8xf32>
    %273 = vector.shape_cast %272 : vector<8xf32> to vector<8x1xf32>
    %cst_159 = arith.constant 3.200000e+01 : f32
    %274 = vector.broadcast %cst_159 : f32 to vector<8x1xf32>
    %275 = arith.divf %273, %274 : vector<8x1xf32>
    %276 = vector.broadcast %275 : vector<8x1xf32> to vector<8x32xf32>
    %277 = arith.subf %269, %276 : vector<8x32xf32>
    %278 = arith.mulf %277, %277 : vector<8x32xf32>
    %cst_160 = arith.constant dense<0.000000e+00> : vector<8xf32>
    %279 = vector.multi_reduction <add>, %278, %cst_160 [1] : vector<8x32xf32> to vector<8xf32>
    %280 = vector.shape_cast %279 : vector<8xf32> to vector<8x1xf32>
    %cst_161 = arith.constant 3.200000e+01 : f32
    %281 = vector.broadcast %cst_161 : f32 to vector<8x1xf32>
    %282 = arith.divf %280, %281 : vector<8x1xf32>
    %283 = vector.broadcast %275 : vector<8x1xf32> to vector<8x32xf32>
    %284 = arith.subf %269, %283 : vector<8x32xf32>
    %cst_162 = arith.constant 9.99999996E-13 : f32
    %285 = vector.broadcast %cst_162 : f32 to vector<8x1xf32>
    %286 = arith.addf %282, %285 : vector<8x1xf32>
    %287 = math.rsqrt %286 : vector<8x1xf32>
    %288 = vector.broadcast %287 : vector<8x1xf32> to vector<8x32xf32>
    %289 = arith.mulf %284, %288 : vector<8x32xf32>
    %290 = vector.broadcast %270 : vector<1x32xf32> to vector<8x32xf32>
    %291 = arith.mulf %289, %290 : vector<8x32xf32>
    %292 = vector.broadcast %271 : vector<1x32xf32> to vector<8x32xf32>
    %293 = arith.addf %291, %292 : vector<8x32xf32>
    %c1_163 = arith.constant 1 : index
    %c0_164 = arith.constant 0 : index
    %c0_165 = arith.constant 0 : index
    %294 = vector.load %arg5[%c1_163, %c0_164, %c0_165] : memref<2x33x64xf32, #tpu.memory_space<vmem>>, vector<1x32x64xf32>
    %295 = vector.shape_cast %294 : vector<1x32x64xf32> to vector<32x64xf32>
    %cst_166 = arith.constant dense<0.000000e+00> : vector<8x64xf32>
    %296 = tpu.matmul %293, %295, %cst_166 {dimension_numbers = #tpu.dot_dimension_numbers<[1], [0], [0], [1], [0, 0, 1, 1], [], []>} : vector<8x32xf32>, vector<32x64xf32>, vector<8x64xf32> -> vector<8x64xf32>
    %c1_167 = arith.constant 1 : index
    %c32_168 = arith.constant 32 : index
    %c0_169 = arith.constant 0 : index
    %297 = vector.load %arg5[%c1_167, %c32_168, %c0_169] : memref<2x33x64xf32, #tpu.memory_space<vmem>>, vector<1x1x64xf32>
    %298 = vector.shape_cast %297 : vector<1x1x64xf32> to vector<1x64xf32>
    %299 = vector.broadcast %298 : vector<1x64xf32> to vector<8x64xf32>
    %300 = arith.addf %296, %299 : vector<8x64xf32>
    %cst_170 = arith.constant 5.000000e-01 : f32
    %301 = vector.broadcast %cst_170 : f32 to vector<8x64xf32>
    %302 = arith.mulf %301, %300 : vector<8x64xf32>
    %cst_171 = arith.constant 4.471500e-02 : f32
    %303 = vector.broadcast %cst_171 : f32 to vector<8x64xf32>
    %304 = arith.mulf %303, %300 : vector<8x64xf32>
    %305 = arith.mulf %304, %300 : vector<8x64xf32>
    %306 = arith.mulf %305, %300 : vector<8x64xf32>
    %307 = arith.addf %300, %306 : vector<8x64xf32>
    %cst_172 = arith.constant 0.797884583 : f32
    %308 = vector.broadcast %cst_172 : f32 to vector<8x64xf32>
    %309 = arith.mulf %308, %307 : vector<8x64xf32>
    %310 = math.tanh %309 : vector<8x64xf32>
    %cst_173 = arith.constant 1.000000e+00 : f32
    %311 = vector.broadcast %cst_173 : f32 to vector<8x64xf32>
    %312 = arith.addf %311, %310 : vector<8x64xf32>
    %313 = arith.mulf %302, %312 : vector<8x64xf32>
    %c1_174 = arith.constant 1 : index
    %c0_175 = arith.constant 0 : index
    %c0_176 = arith.constant 0 : index
    %314 = vector.load %arg6[%c1_174, %c0_175, %c0_176] : memref<2x65x32xf32, #tpu.memory_space<vmem>>, vector<1x64x32xf32>
    %315 = vector.shape_cast %314 : vector<1x64x32xf32> to vector<64x32xf32>
    %cst_177 = arith.constant dense<0.000000e+00> : vector<8x32xf32>
    %316 = tpu.matmul %313, %315, %cst_177 {dimension_numbers = #tpu.dot_dimension_numbers<[1], [0], [0], [1], [0, 0, 1, 1], [], []>} : vector<8x64xf32>, vector<64x32xf32>, vector<8x32xf32> -> vector<8x32xf32>
    %c1_178 = arith.constant 1 : index
    %c64_179 = arith.constant 64 : index
    %c0_180 = arith.constant 0 : index
    %317 = vector.load %arg6[%c1_178, %c64_179, %c0_180] : memref<2x65x32xf32, #tpu.memory_space<vmem>>, vector<1x1x32xf32>
    %318 = vector.shape_cast %317 : vector<1x1x32xf32> to vector<1x32xf32>
    %319 = vector.broadcast %318 : vector<1x32xf32> to vector<8x32xf32>
    %320 = arith.addf %316, %319 : vector<8x32xf32>
    %321 = arith.addf %293, %320 : vector<8x32xf32>
    %c8_181 = arith.constant 8 : index
    %c0_182 = arith.constant 0 : index
    %322 = vector.load %arg7[%c8_181, %c0_182] : memref<10x32xf32, #tpu.memory_space<vmem>>, vector<1x32xf32>
    %c9_183 = arith.constant 9 : index
    %c0_184 = arith.constant 0 : index
    %323 = vector.load %arg7[%c9_183, %c0_184] : memref<10x32xf32, #tpu.memory_space<vmem>>, vector<1x32xf32>
    %cst_185 = arith.constant dense<0.000000e+00> : vector<8xf32>
    %324 = vector.multi_reduction <add>, %321, %cst_185 [1] : vector<8x32xf32> to vector<8xf32>
    %325 = vector.shape_cast %324 : vector<8xf32> to vector<8x1xf32>
    %cst_186 = arith.constant 3.200000e+01 : f32
    %326 = vector.broadcast %cst_186 : f32 to vector<8x1xf32>
    %327 = arith.divf %325, %326 : vector<8x1xf32>
    %328 = vector.broadcast %327 : vector<8x1xf32> to vector<8x32xf32>
    %329 = arith.subf %321, %328 : vector<8x32xf32>
    %330 = arith.mulf %329, %329 : vector<8x32xf32>
    %cst_187 = arith.constant dense<0.000000e+00> : vector<8xf32>
    %331 = vector.multi_reduction <add>, %330, %cst_187 [1] : vector<8x32xf32> to vector<8xf32>
    %332 = vector.shape_cast %331 : vector<8xf32> to vector<8x1xf32>
    %cst_188 = arith.constant 3.200000e+01 : f32
    %333 = vector.broadcast %cst_188 : f32 to vector<8x1xf32>
    %334 = arith.divf %332, %333 : vector<8x1xf32>
    %335 = vector.broadcast %327 : vector<8x1xf32> to vector<8x32xf32>
    %336 = arith.subf %321, %335 : vector<8x32xf32>
    %cst_189 = arith.constant 9.99999996E-13 : f32
    %337 = vector.broadcast %cst_189 : f32 to vector<8x1xf32>
    %338 = arith.addf %334, %337 : vector<8x1xf32>
    %339 = math.rsqrt %338 : vector<8x1xf32>
    %340 = vector.broadcast %339 : vector<8x1xf32> to vector<8x32xf32>
    %341 = arith.mulf %336, %340 : vector<8x32xf32>
    %342 = vector.broadcast %322 : vector<1x32xf32> to vector<8x32xf32>
    %343 = arith.mulf %341, %342 : vector<8x32xf32>
    %344 = vector.broadcast %323 : vector<1x32xf32> to vector<8x32xf32>
    %345 = arith.addf %343, %344 : vector<8x32xf32>
    %c0_190 = arith.constant 0 : index
    %c0_191 = arith.constant 0 : index
    %c0_192 = arith.constant 0 : index
    %346 = vector.load %arg8[%c0_190, %c0_191, %c0_192] : memref<2x33x128xf32, #tpu.memory_space<vmem>>, vector<1x32x128xf32>
    %347 = vector.shape_cast %346 : vector<1x32x128xf32> to vector<32x128xf32>
    %cst_193 = arith.constant dense<0.000000e+00> : vector<8x128xf32>
    %348 = tpu.matmul %345, %347, %cst_193 {dimension_numbers = #tpu.dot_dimension_numbers<[1], [0], [0], [1], [0, 0, 1, 1], [], []>} : vector<8x32xf32>, vector<32x128xf32>, vector<8x128xf32> -> vector<8x128xf32>
    %c0_194 = arith.constant 0 : index
    %c32_195 = arith.constant 32 : index
    %c0_196 = arith.constant 0 : index
    %349 = vector.load %arg8[%c0_194, %c32_195, %c0_196] : memref<2x33x128xf32, #tpu.memory_space<vmem>>, vector<1x1x128xf32>
    %350 = vector.shape_cast %349 : vector<1x1x128xf32> to vector<1x128xf32>
    %351 = vector.broadcast %350 : vector<1x128xf32> to vector<8x128xf32>
    %352 = arith.addf %348, %351 : vector<8x128xf32>
    %353 = math.tanh %352 : vector<8x128xf32>
    %354 = vector.extract_strided_slice %353 {offsets = [0, 0], sizes = [8, 32], strides = [1, 1]} : vector<8x128xf32> to vector<8x32xf32>
    %c1_197 = arith.constant 1 : index
    %c0_198 = arith.constant 0 : index
    %c0_199 = arith.constant 0 : index
    %355 = vector.load %arg8[%c1_197, %c0_198, %c0_199] : memref<2x33x128xf32, #tpu.memory_space<vmem>>, vector<1x32x128xf32>
    %356 = vector.shape_cast %355 : vector<1x32x128xf32> to vector<32x128xf32>
    %cst_200 = arith.constant dense<0.000000e+00> : vector<8x128xf32>
    %357 = tpu.matmul %354, %356, %cst_200 {dimension_numbers = #tpu.dot_dimension_numbers<[1], [0], [0], [1], [0, 0, 1, 1], [], []>} : vector<8x32xf32>, vector<32x128xf32>, vector<8x128xf32> -> vector<8x128xf32>
    %c1_201 = arith.constant 1 : index
    %c32_202 = arith.constant 32 : index
    %c0_203 = arith.constant 0 : index
    %358 = vector.load %arg8[%c1_201, %c32_202, %c0_203] : memref<2x33x128xf32, #tpu.memory_space<vmem>>, vector<1x1x128xf32>
    %359 = vector.shape_cast %358 : vector<1x1x128xf32> to vector<1x128xf32>
    %360 = vector.broadcast %359 : vector<1x128xf32> to vector<8x128xf32>
    %361 = arith.addf %357, %360 : vector<8x128xf32>
    %c0_204 = arith.constant 0 : index
    %c0_205 = arith.constant 0 : index
    %c0_206 = arith.constant 0 : index
    %362 = vector.load %arg9[%c0_204, %c0_205, %c0_206] : memref<1x8x128xf32, #tpu.memory_space<vmem>>, vector<1x8x128xf32>
    %363 = vector.shape_cast %362 : vector<1x8x128xf32> to vector<8x128xf32>
    %364 = vector.shape_cast %361 : vector<8x128xf32> to vector<1x8x128xf32>
    tpu.vector_store %arg9[%c0_204, %c0_205, %c0_206], %364 {strides = array<i32>} : memref<1x8x128xf32, #tpu.memory_space<vmem>>, vector<1x8x128xf32>,
    return
  }
  func.func @transform_0(%arg0: i32) -> (i32, i32, i32) {
    %c0_i32 = arith.constant 0 : i32
    %c0_i32_0 = arith.constant 0 : i32
    %c0_i32_1 = arith.constant 0 : i32
    return %arg0, %c0_i32, %c0_i32_0 : i32, i32, i32
  }
  func.func @transform_1(%arg0: i32) -> (i32, i32, i32) {
    %c0_i32 = arith.constant 0 : i32
    %c0_i32_0 = arith.constant 0 : i32
    %c0_i32_1 = arith.constant 0 : i32
    return %arg0, %c0_i32, %c0_i32_0 : i32, i32, i32
  }
  func.func @transform_2(%arg0: i32) -> (i32, i32, i32) {
    %c0_i32 = arith.constant 0 : i32
    %c0_i32_0 = arith.constant 0 : i32
    %c0_i32_1 = arith.constant 0 : i32
    %c0_i32_2 = arith.constant 0 : i32
    return %c0_i32, %c0_i32_0, %c0_i32_1 : i32, i32, i32
  }
  func.func @transform_3(%arg0: i32) -> (i32, i32, i32) {
    %c0_i32 = arith.constant 0 : i32
    %c0_i32_0 = arith.constant 0 : i32
    %c0_i32_1 = arith.constant 0 : i32
    %c0_i32_2 = arith.constant 0 : i32
    return %c0_i32, %c0_i32_0, %c0_i32_1 : i32, i32, i32
  }
  func.func @transform_4(%arg0: i32) -> (i32, i32, i32) {
    %c0_i32 = arith.constant 0 : i32
    %c0_i32_0 = arith.constant 0 : i32
    %c0_i32_1 = arith.constant 0 : i32
    %c0_i32_2 = arith.constant 0 : i32
    return %c0_i32, %c0_i32_0, %c0_i32_1 : i32, i32, i32
  }
  func.func @transform_5(%arg0: i32) -> (i32, i32, i32) {
    %c0_i32 = arith.constant 0 : i32
    %c0_i32_0 = arith.constant 0 : i32
    %c0_i32_1 = arith.constant 0 : i32
    %c0_i32_2 = arith.constant 0 : i32
    return %c0_i32, %c0_i32_0, %c0_i32_1 : i32, i32, i32
  }
  func.func @transform_6(%arg0: i32) -> (i32, i32) {
    %c0_i32 = arith.constant 0 : i32
    %c0_i32_0 = arith.constant 0 : i32
    %c0_i32_1 = arith.constant 0 : i32
    return %c0_i32, %c0_i32_0 : i32, i32
  }
  func.func @transform_7(%arg0: i32) -> (i32, i32, i32) {
    %c0_i32 = arith.constant 0 : i32
    %c0_i32_0 = arith.constant 0 : i32
    %c0_i32_1 = arith.constant 0 : i32
    %c0_i32_2 = arith.constant 0 : i32
    return %c0_i32, %c0_i32_0, %c0_i32_1 : i32, i32, i32
  }
  func.func @transform_8(%arg0: i32) -> (i32, i32, i32) {
    %c0_i32 = arith.constant 0 : i32
    %c0_i32_0 = arith.constant 0 : i32
    %c0_i32_1 = arith.constant 0 : i32
    return %arg0, %c0_i32, %c0_i32_0 : i32, i32, i32
  }
}

</mosaic_0001>

<llo_original>
// kernel: forward.1
$region0: #{forward.1}
  #allocation0 [shape = 'u32[]', space=smem, size = 0x4, offset = 0x4, fixed_abs, tag = 'smem constant byte address 0x4 - core index']
  #allocation1 [shape = 'u32[72,128]{1,0:T(1,128)}', space=vmem, size = 0x9000, scoped, tag = 'internal scratch']
  %s0 = inlined_call_operand.vmem [shape: f32[2,8,32], index: 0, kind: input, shape index: {}]
  %s1 = inlined_call_operand.vmem [shape: f32[2,1,8], index: 1, kind: input, shape index: {}]
  %s2 = inlined_call_operand.hbm [shape: f32[12,33,16], index: 2, kind: input, shape index: {}]
  %s3 = inlined_call_operand.vmem [shape: f32[2,33,32], index: 3, kind: input, shape index: {}]
  %s4 = inlined_call_operand.vmem [shape: f32[2,33,64], index: 4, kind: input, shape index: {}]
  %s5 = inlined_call_operand.vmem [shape: f32[2,65,32], index: 5, kind: input, shape index: {}]
  %s6 = inlined_call_operand.vmem [shape: f32[10,32], index: 6, kind: input, shape index: {}]
  %s7 = inlined_call_operand.hbm [shape: f32[2,33,128], index: 7, kind: input, shape index: {}]
  %s8 = inlined_call_operand.vmem [shape: f32[2,8,128], index: 8, kind: output, shape index: {}]
  %s9 = sld [smem:[#allocation0]]
  $region73: #{forward.1} parent=0
    _
  %s11 = ssub.s32 1, %s9
  %s12 = scalar_select 0, %s11, %s9
  $region1: #{forward.1} parent=0
    #allocation2 [shape = 'u8[245760]{0}', space=vmem, size = 0x3c000, scoped, tag = 'input window, operand 2, single buffered']
    #allocation3 [shape = 's32[2]{0}', space=sflag, size = 0x8, scoped, tag = 'scoped memory for forward.1']
    #allocation4 [shape = 'u8[40960]{0}', space=vmem, size = 0xa000, scoped, tag = 'input window, operand 7, single buffered']
    #allocation5 [shape = 's32[1]{0}', space=sflag, size = 0x4, scoped, tag = 'scoped memory for forward.1']
    %13 = vsyncpa [#allocation3], 0
    %14 = vsyncpa [#allocation5], 0
    loop: start=0, step=1, limit=4
    $region2: #{forward.1} parent=1 // loop_pre_header
      _
    $region3: #{forward.1} parent=1 // loop_header
      %s16 = sphi 0, %s20
      %p17 = scmp.ge.s32.totalorder %s16, 4
      %s26 = sphi 0, %s28
      %s29 = sphi 0, %s26
      %s30 = sphi 0, %s29
      %s46 = sphi 0, %s30
      %s52 = sphi 0, %s54
      %s55 = sphi 0, %s52
      %s56 = sphi 0, %s55
      %s72 = sphi 0, %s56
      %s76 = sphi 0, %s76
      %s78 = sphi 0, %s76
      %s79 = sphi 0, %s78
      %s93 = sphi 0, %s79
      %s97 = sphi 0, %s97
      %s99 = sphi 0, %s97
      %s100 = sphi 0, %s99
      %s114 = sphi 0, %s100
      %s118 = sphi 0, %s118
      %s120 = sphi 0, %s118
      %s121 = sphi 0, %s120
      %s135 = sphi 0, %s121
      %s139 = sphi 0, %s139
      %s141 = sphi 0, %s139
      %s142 = sphi 0, %s141
      %s156 = sphi 0, %s142
      %s160 = sphi 0, %s160
      %s162 = sphi 0, %s160
      %s163 = sphi 0, %s162
      %s177 = sphi 0, %s163
      %s181 = sphi 0, %s181
      %s183 = sphi 0, %s181
      %s184 = sphi 0, %s183
      %s198 = sphi 0, %s184
      %s204 = sphi 0, %s206
      %s207 = sphi 0, %s204
      %s208 = sphi 0, %s207
      %s224 = sphi 0, %s208
    $region4: #{forward.1} parent=1 // loop_header_branch
      %19 = sbr.rel (%p17) target = $region8
    $region5: #{forward.1} parent=1 // loop_body
      %s21 = ssub.s32 %s16, 1
      %s22 = ssub.s32 %s16, 2
      %s23 = sadd.s32 %s16, 1
      %s24 = ssub.s32 %s16, %s23
      %p25 = scmp.eq.s32.totalorder %s24, 0
      %s27 = sadd.s32 %s26, 1
      %s28 = scalar_select %p25, %s26, %s27
      %p31 = pneg %p25
      %p32 = scmp.eq.s32.totalorder %s16, 1
      %p33 = por %p31, %p32
      %p34 = scmp.ne.s32.totalorder %s26, %s29
      %p35 = scmp.eq.s32.totalorder %s16, 0
      %p36 = por %p34, %p35
      %p37 = scmp.ne.s32.totalorder %s26, %s29
      %p38 = scmp.eq.s32.totalorder %s21, 1
      %p39 = por %p37, %p38
      %p40 = scmp.ne.s32.totalorder %s29, %s30
      %p41 = scmp.eq.s32.totalorder %s21, 0
      %p42 = por %p40, %p41
      %p43 = scmp.ne.s32.totalorder %s29, %s30
      %p44 = scmp.eq.s32.totalorder %s22, 1
      %p45 = por %p43, %p44
      %p47 = scmp.ne.s32.totalorder %s30, %s46
      %p48 = scmp.eq.s32.totalorder %s22, 0
      %p49 = por %p47, %p48
      %s50 = ssub.s32 %s16, %s23
      %p51 = scmp.eq.s32.totalorder %s50, 0
      %s53 = sadd.s32 %s52, 1
      %s54 = scalar_select %p51, %s52, %s53
      %p57 = pneg %p51
      %p58 = scmp.eq.s32.totalorder %s16, 1
      %p59 = por %p57, %p58
      %p60 = scmp.ne.s32.totalorder %s52, %s55
      %p61 = scmp.eq.s32.totalorder %s16, 0
      %p62 = por %p60, %p61
      %p63 = scmp.ne.s32.totalorder %s52, %s55
      %p64 = scmp.eq.s32.totalorder %s21, 1
      %p65 = por %p63, %p64
      %p66 = scmp.ne.s32.totalorder %s55, %s56
      %p67 = scmp.eq.s32.totalorder %s21, 0
      %p68 = por %p66, %p67
      %p69 = scmp.ne.s32.totalorder %s55, %s56
      %p70 = scmp.eq.s32.totalorder %s22, 1
      %p71 = por %p69, %p70
      %p73 = scmp.ne.s32.totalorder %s56, %s72
      %p74 = scmp.eq.s32.totalorder %s22, 0
      %p75 = por %p73, %p74
      %s77 = sadd.s32 %s76, 1
      %p80 = scmp.eq.s32.totalorder %s16, 1
      %p81 = scmp.ne.s32.totalorder %s76, %s78
      %p82 = scmp.eq.s32.totalorder %s16, 0
      %p83 = por %p81, %p82
      %p84 = scmp.ne.s32.totalorder %s76, %s78
      %p85 = scmp.eq.s32.totalorder %s21, 1
      %p86 = por %p84, %p85
      %p87 = scmp.ne.s32.totalorder %s78, %s79
      %p88 = scmp.eq.s32.totalorder %s21, 0
      %p89 = por %p87, %p88
      %p90 = scmp.ne.s32.totalorder %s78, %s79
      %p91 = scmp.eq.s32.totalorder %s22, 1
      %p92 = por %p90, %p91
      %p94 = scmp.ne.s32.totalorder %s79, %s93
      %p95 = scmp.eq.s32.totalorder %s22, 0
      %p96 = por %p94, %p95
      %s98 = sadd.s32 %s97, 1
      %p101 = scmp.eq.s32.totalorder %s16, 1
      %p102 = scmp.ne.s32.totalorder %s97, %s99
      %p103 = scmp.eq.s32.totalorder %s16, 0
      %p104 = por %p102, %p103
      %p105 = scmp.ne.s32.totalorder %s97, %s99
      %p106 = scmp.eq.s32.totalorder %s21, 1
      %p107 = por %p105, %p106
      %p108 = scmp.ne.s32.totalorder %s99, %s100
      %p109 = scmp.eq.s32.totalorder %s21, 0
      %p110 = por %p108, %p109
      %p111 = scmp.ne.s32.totalorder %s99, %s100
      %p112 = scmp.eq.s32.totalorder %s22, 1
      %p113 = por %p111, %p112
      %p115 = scmp.ne.s32.totalorder %s100, %s114
      %p116 = scmp.eq.s32.totalorder %s22, 0
      %p117 = por %p115, %p116
      %s119 = sadd.s32 %s118, 1
      %p122 = scmp.eq.s32.totalorder %s16, 1
      %p123 = scmp.ne.s32.totalorder %s118, %s120
      %p124 = scmp.eq.s32.totalorder %s16, 0
      %p125 = por %p123, %p124
      %p126 = scmp.ne.s32.totalorder %s118, %s120
      %p127 = scmp.eq.s32.totalorder %s21, 1
      %p128 = por %p126, %p127
      %p129 = scmp.ne.s32.totalorder %s120, %s121
      %p130 = scmp.eq.s32.totalorder %s21, 0
      %p131 = por %p129, %p130
      %p132 = scmp.ne.s32.totalorder %s120, %s121
      %p133 = scmp.eq.s32.totalorder %s22, 1
      %p134 = por %p132, %p133
      %p136 = scmp.ne.s32.totalorder %s121, %s135
      %p137 = scmp.eq.s32.totalorder %s22, 0
      %p138 = por %p136, %p137
      %s140 = sadd.s32 %s139, 1
      %p143 = scmp.eq.s32.totalorder %s16, 1
      %p144 = scmp.ne.s32.totalorder %s139, %s141
      %p145 = scmp.eq.s32.totalorder %s16, 0
      %p146 = por %p144, %p145
      %p147 = scmp.ne.s32.totalorder %s139, %s141
      %p148 = scmp.eq.s32.totalorder %s21, 1
      %p149 = por %p147, %p148
      %p150 = scmp.ne.s32.totalorder %s141, %s142
      %p151 = scmp.eq.s32.totalorder %s21, 0
      %p152 = por %p150, %p151
      %p153 = scmp.ne.s32.totalorder %s141, %s142
      %p154 = scmp.eq.s32.totalorder %s22, 1
      %p155 = por %p153, %p154
      %p157 = scmp.ne.s32.totalorder %s142, %s156
      %p158 = scmp.eq.s32.totalorder %s22, 0
      %p159 = por %p157, %p158
      %s161 = sadd.s32 %s160, 1
      %p164 = scmp.eq.s32.totalorder %s16, 1
      %p165 = scmp.ne.s32.totalorder %s160, %s162
      %p166 = scmp.eq.s32.totalorder %s16, 0
      %p167 = por %p165, %p166
      %p168 = scmp.ne.s32.totalorder %s160, %s162
      %p169 = scmp.eq.s32.totalorder %s21, 1
      %p170 = por %p168, %p169
      %p171 = scmp.ne.s32.totalorder %s162, %s163
      %p172 = scmp.eq.s32.totalorder %s21, 0
      %p173 = por %p171, %p172
      %p174 = scmp.ne.s32.totalorder %s162, %s163
      %p175 = scmp.eq.s32.totalorder %s22, 1
      %p176 = por %p174, %p175
      %p178 = scmp.ne.s32.totalorder %s163, %s177
      %p179 = scmp.eq.s32.totalorder %s22, 0
      %p180 = por %p178, %p179
      %s182 = sadd.s32 %s181, 1
      %p185 = scmp.eq.s32.totalorder %s16, 1
      %p186 = scmp.ne.s32.totalorder %s181, %s183
      %p187 = scmp.eq.s32.totalorder %s16, 0
      %p188 = por %p186, %p187
      %p189 = scmp.ne.s32.totalorder %s181, %s183
      %p190 = scmp.eq.s32.totalorder %s21, 1
      %p191 = por %p189, %p190
      %p192 = scmp.ne.s32.totalorder %s183, %s184
      %p193 = scmp.eq.s32.totalorder %s21, 0
      %p194 = por %p192, %p193
      %p195 = scmp.ne.s32.totalorder %s183, %s184
      %p196 = scmp.eq.s32.totalorder %s22, 1
      %p197 = por %p195, %p196
      %p199 = scmp.ne.s32.totalorder %s184, %s198
      %p200 = scmp.eq.s32.totalorder %s22, 0
      %p201 = por %p199, %p200
      %s202 = ssub.s32 %s16, %s23
      %p203 = scmp.eq.s32.totalorder %s202, 0
      %s205 = sadd.s32 %s204, 1
      %s206 = scalar_select %p203, %s204, %s205
      %p209 = pneg %p203
      %p210 = scmp.eq.s32.totalorder %s16, 1
      %p211 = por %p209, %p210
      %p212 = scmp.ne.s32.totalorder %s204, %s207
      %p213 = scmp.eq.s32.totalorder %s16, 0
      %p214 = por %p212, %p213
      %p215 = scmp.ne.s32.totalorder %s204, %s207
      %p216 = scmp.eq.s32.totalorder %s21, 1
      %p217 = por %p215, %p216
      %p218 = scmp.ne.s32.totalorder %s207, %s208
      %p219 = scmp.eq.s32.totalorder %s21, 0
      %p220 = por %p218, %p219
      %p221 = scmp.ne.s32.totalorder %s207, %s208
      %p222 = scmp.eq.s32.totalorder %s22, 1
      %p223 = por %p221, %p222
      %p225 = scmp.ne.s32.totalorder %s208, %s224
      %p226 = scmp.eq.s32.totalorder %s22, 0
      %p227 = por %p225, %p226
      %p228 = scmp.le.s32.totalorder 1, %s16
      %p229 = scmp.lt.s32.totalorder %s16, 3
      %p230 = pnand %p228, %p229
      %p231 = pneg %p230
      // Predicated region
      $region9: #{forward.1} parent=5 // pred_check
        _
      $region10: #{forward.1} parent=5 // pred_check_branch
        %233 = sbr.rel (%p230) target = $region12
      $region11: #{forward.1} parent=5 // pred_region
        %s234 = ssub.s32 %s16, 1
        // Predicated region
        $region13: #{forward.1} parent=11 // pred_check
          %p235 = pneg %p89
        $region14: #{forward.1} parent=11 // pred_check_branch
          %237 = sbr.rel (%p235) target = $region16
        $region15: #{forward.1} parent=11 // pred_region
          %239 = vsyncadd [#allocation3], 0
          %s240 = sshll.u32 %s2, 4
          %s241 = int_to_ptr.hbm [resolvable:$true] %s240
          %s242 = sshll.u32 [#allocation2], 4
          %s243 = int_to_ptr.vmem [resolvable:$true] %s242
          %248 = dma.hbm_to_vmem [thread:$0]  %s241, 7680, %s243, [#allocation3], 128, 128, 8
        $region16: #{forward.1} parent=11 // pred_fallthru
          _
        // Predicated region
        $region17: #{forward.1} parent=11 // pred_check
          %p249 = pneg %p110
        $region18: #{forward.1} parent=11 // pred_check_branch
          %251 = sbr.rel (%p249) target = $region20
        $region19: #{forward.1} parent=11 // pred_region
          _
        $region20: #{forward.1} parent=11 // pred_fallthru
          _
        // Predicated region
        $region21: #{forward.1} parent=11 // pred_check
          %p252 = pneg %p131
        $region22: #{forward.1} parent=11 // pred_check_branch
          %254 = sbr.rel (%p252) target = $region24
        $region23: #{forward.1} parent=11 // pred_region
          _
        $region24: #{forward.1} parent=11 // pred_fallthru
          _
        // Predicated region
        $region25: #{forward.1} parent=11 // pred_check
          %p255 = pneg %p152
        $region26: #{forward.1} parent=11 // pred_check_branch
          %257 = sbr.rel (%p255) target = $region28
        $region27: #{forward.1} parent=11 // pred_region
          _
        $region28: #{forward.1} parent=11 // pred_fallthru
          _
        // Predicated region
        $region29: #{forward.1} parent=11 // pred_check
          %p258 = pneg %p173
        $region30: #{forward.1} parent=11 // pred_check_branch
          %260 = sbr.rel (%p258) target = $region32
        $region31: #{forward.1} parent=11 // pred_region
          _
        $region32: #{forward.1} parent=11 // pred_fallthru
          _
        // Predicated region
        $region33: #{forward.1} parent=11 // pred_check
          %p261 = pneg %p194
        $region34: #{forward.1} parent=11 // pred_check_branch
          %263 = sbr.rel (%p261) target = $region36
        $region35: #{forward.1} parent=11 // pred_region
          %265 = vsyncadd [#allocation5], 0
          %s266 = sshll.u32 %s7, 4
          %s267 = int_to_ptr.hbm [resolvable:$true] %s266
          %s268 = sshll.u32 [#allocation4], 4
          %s269 = int_to_ptr.vmem [resolvable:$true] %s268
          %274 = dma.hbm_to_vmem [thread:$0]  %s267, 1280, %s269, [#allocation5], 128, 128, 8
        $region36: #{forward.1} parent=11 // pred_fallthru
          _
      $region12: #{forward.1} parent=5 // pred_fallthru
        _
      %p275 = scmp.lt.s32.totalorder %s16, 2
      // Predicated region
      $region37: #{forward.1} parent=5 // pred_check
        %p276 = pneg %p275
      $region38: #{forward.1} parent=5 // pred_check_branch
        %278 = sbr.rel (%p276) target = $region40
      $region39: #{forward.1} parent=5 // pred_region
        // Predicated region
        $region41: #{forward.1} parent=39 // pred_check
          %p279 = pneg %p36
        $region42: #{forward.1} parent=39 // pred_check_branch
          %281 = sbr.rel (%p279) target = $region44
        $region43: #{forward.1} parent=39 // pred_region
          %p282 = scmp.lt.s32.totalorder %s16, 1
          %s283 = scalar_select %p282, %s16, 1
          %s284 = smul.addr %s283, 8
          %s285 = scalar_lea.vmem %s0, %s284
        $region44: #{forward.1} parent=39 // pred_fallthru
          _
        // Predicated region
        $region45: #{forward.1} parent=39 // pred_check
          %p286 = pneg %p62
        $region46: #{forward.1} parent=39 // pred_check_branch
          %288 = sbr.rel (%p286) target = $region48
        $region47: #{forward.1} parent=39 // pred_region
          %p289 = scmp.lt.s32.totalorder %s16, 1
          %s290 = scalar_select %p289, %s16, 1
          %s291 = scalar_lea.vmem %s1, %s290
        $region48: #{forward.1} parent=39 // pred_fallthru
          _
      $region40: #{forward.1} parent=5 // pred_fallthru
        _
      %p292 = scmp.le.s32.totalorder 1, %s16
      %p293 = scmp.lt.s32.totalorder %s16, 3
      %p294 = pnand %p292, %p293
      %p295 = pneg %p294
      // Predicated region
      $region49: #{forward.1} parent=5 // pred_check
        _
      $region50: #{forward.1} parent=5 // pred_check_branch
        %297 = sbr.rel (%p294) target = $region52
      $region51: #{forward.1} parent=5 // pred_region
        %s298 = ssub.s32 %s16, 1
        // Predicated region
        $region53: #{forward.1} parent=51 // pred_check
          %p299 = pneg %p89
        $region54: #{forward.1} parent=51 // pred_check_branch
          %301 = sbr.rel (%p299) target = $region56
        $region55: #{forward.1} parent=51 // pred_region
          %303 = dma.done [#allocation3], 7680
        $region56: #{forward.1} parent=51 // pred_fallthru
          _
        // Predicated region
        $region57: #{forward.1} parent=51 // pred_check
          %p304 = pneg %p194
        $region58: #{forward.1} parent=51 // pred_check_branch
          %306 = sbr.rel (%p304) target = $region60
        $region59: #{forward.1} parent=51 // pred_region
          %308 = dma.done [#allocation5], 1280
        $region60: #{forward.1} parent=51 // pred_fallthru
          _
        %p309 = scmp.lt.s32.totalorder %s21, 1
        %s310 = scalar_select %p309, %s21, 1
        %s311 = smul.addr %s310, 8
        %s312 = scalar_lea.vmem %s0, %s311
        %p313 = pneg %p42
        %p314 = pneg %p39
        %p315 = scmp.lt.s32.totalorder %s21, 1
        %s316 = scalar_select %p315, %s21, 1
        %s317 = scalar_lea.vmem %s1, %s316
        %p318 = pneg %p68
        %p319 = pneg %p65
        %p320 = pneg %p89
        %p321 = pneg %p86
        %p322 = pneg %p110
        %p323 = pneg %p107
        %p324 = pneg %p131
        %p325 = pneg %p128
        %p326 = pneg %p152
        %p327 = pneg %p149
        %p328 = pneg %p173
        %p329 = pneg %p170
        %p330 = pneg %p194
        %p331 = pneg %p191
        %p332 = pneg %p220
        %p333 = pneg %p217
        %p334 = scmp.lt.s32.totalorder %s21, 1
        %s335 = scalar_select %p334, %s21, 1
        %s336 = smul.addr %s335, 8
        %s337 = scalar_lea.vmem %s8, %s336
        %p338 = scmp.lt.s32.totalorder %s21, 1
        %s339 = scalar_select %p338, %s21, 1
        %s340 = smul.addr %s339, 8
        %s341 = scalar_lea.vmem %s0, %s340
        %p342 = scmp.lt.s32.totalorder %s21, 1
        %s343 = scalar_select %p342, %s21, 1
        %s344 = scalar_lea.vmem %s1, %s343
        %p345 = scmp.lt.s32.totalorder %s21, 1
        %s346 = scalar_select %p345, %s21, 1
        %s347 = smul.addr %s346, 8
        %s348 = scalar_lea.vmem %s8, %s347
        %v349 = vld [vmem:[%s341] sm:$0xff]
        %v350 = vld [vmem:[%s6] sm:$0x1]
        %v351 = vld [vmem:[%s6 + $0x1] sm:$0x1]
        %vm352 = vcmask 261120
        %v353 = vsel %vm352, %v349, 0.0
        %354 = vadd.xlane.f32.xlu0 %v353
        %v355 = vpop.xlane.xlu0 %354
        %v356 = vrcp.pop 32.0
        %v357 = vmul.f32 32.0, %v356
        %v358 = vsub.f32 1.0, %v357
        %v359 = vmul.f32 %v356, %v358
        %v360 = vadd.f32 %v356, %v359
        %vm361 = vweird.f32 %v356
        %v362 = vsel %vm361, %v356, %v360
        %v363 = vmul.f32 %v355, %v362
        %v364 = vsub.f32 %v349, %v363
        %v365 = vmul.f32 %v364, %v364
        %v366 = vsel %vm352, %v365, 0.0
        %367 = vadd.xlane.f32.xlu0 %v366
        %v368 = vpop.xlane.xlu0 %367
        %v369 = vmul.f32 %v368, %v362
        %v370 = vadd.f32 %v369, 1e-12
        %v371 = vrsqrt.pop %v370
        %v372 = vmul.f32 %v371, %v370
        %v373 = vmul.f32 %v372, %v371
        %v374 = vmul.f32 0.5, %v373
        %v375 = vsub.f32 1.5, %v374
        %v376 = vmul.f32 %v371, %v375
        %vm377 = vweird.f32 %v370
        %vm378 = vweird.f32 %v371
        %vm379 = vmor %vm377, %vm378
        %v380 = vsel %vm379, %v371, %v376
        %v381 = vmul.f32 %v364, %v380
        %v382 = vperm.slane %v350, 0
        %v383 = vmul.f32 %v381, %v382
        %v384 = vperm.slane %v351, 0
        %v385 = vadd.f32 %v383, %v384
        %v386 = vld [vmem:[%s344] sm:$0x1]
        %v387 = vld [vmem:[#allocation2] sm:$0xff]
        %v388 = vld [vmem:[#allocation2 + $0x8] sm:$0xff]
        %v389 = vld [vmem:[#allocation2 + $0x10] sm:$0xff]
        %v390 = vld [vmem:[#allocation2 + $0x18] sm:$0xff]
        %v391 = vld [vmem:[#allocation2 + $0x20] sm:$0x1]
        %v392 = vperm.slane %v391, 0
        %v394 = vsel %vm352, %v385, 0
        %396 = vmatpush.msra.mxu0 0.0
        %397 = vmatpush.msra.mxu0 0.0
        %398 = vmatpush.msra.mxu0 0.0
        %399 = vmatpush.msra.mxu0 0.0
        %400 = vmatpush.msra.mxu0 0.0
        %401 = vmatpush.msra.mxu0 0.0
        %402 = vmatpush.msra.mxu0 0.0
        %403 = vmatpush.msra.mxu0 0.0
        %404 = vmatpush.msra.mxu0 0.0
        %405 = vmatpush.msra.mxu0 0.0
        %406 = vmatpush.msra.mxu0 0.0
        %407 = vmatpush.msra.mxu0 0.0
        %408 = vmatpush.msra.mxu0 %v390
        %409 = vmatpush.msra.mxu0 %v389
        %410 = vmatpush.msra.mxu0 %v388
        %411 = vmatpush.msra.mxu0 %v387
        %412 = vmatmul.f32.gmra.mxu0 %v394
        %v413 = vpop.f32.mrf.mxu0
        %v414 = vadd.f32 %v392, %v413
        %415 = vdwg.mxu0
        %s416 = scalar_lea.vmem [#allocation2], 40
        %v417 = vld [vmem:[%s416] sm:$0xff]
        %v418 = vld [vmem:[%s416 + $0x8] sm:$0xff]
        %v419 = vld [vmem:[%s416 + $0x10] sm:$0xff]
        %v420 = vld [vmem:[%s416 + $0x18] sm:$0xff]
        %v421 = vld [vmem:[%s416 + $0x20] sm:$0x1]
        %v422 = vperm.slane %v421, 0
        %423 = vmatpush.msra.mxu0 0.0
        %424 = vmatpush.msra.mxu0 0.0
        %425 = vmatpush.msra.mxu0 0.0
        %426 = vmatpush.msra.mxu0 0.0
        %427 = vmatpush.msra.mxu0 0.0
        %428 = vmatpush.msra.mxu0 0.0
        %429 = vmatpush.msra.mxu0 0.0
        %430 = vmatpush.msra.mxu0 0.0
        %431 = vmatpush.msra.mxu0 0.0
        %432 = vmatpush.msra.mxu0 0.0
        %433 = vmatpush.msra.mxu0 0.0
        %434 = vmatpush.msra.mxu0 0.0
        %435 = vmatpush.msra.mxu0 %v420
        %436 = vmatpush.msra.mxu0 %v419
        %437 = vmatpush.msra.mxu0 %v418
        %438 = vmatpush.msra.mxu0 %v417
        %439 = vmatmul.f32.gmra.mxu0 %v394
        %v440 = vpop.f32.mrf.mxu0
        %v441 = vadd.f32 %v422, %v440
        %442 = vdwg.mxu0
        %s443 = scalar_lea.vmem [#allocation2], 80
        %v444 = vld [vmem:[%s443] sm:$0xff]
        %v445 = vld [vmem:[%s443 + $0x8] sm:$0xff]
        %v446 = vld [vmem:[%s443 + $0x10] sm:$0xff]
        %v447 = vld [vmem:[%s443 + $0x18] sm:$0xff]
        %v448 = vld [vmem:[%s443 + $0x20] sm:$0x1]
        %v449 = vperm.slane %v448, 0
        %450 = vmatpush.msra.mxu0 0.0
        %451 = vmatpush.msra.mxu0 0.0
        %452 = vmatpush.msra.mxu0 0.0
        %453 = vmatpush.msra.mxu0 0.0
        %454 = vmatpush.msra.mxu0 0.0
        %455 = vmatpush.msra.mxu0 0.0
        %456 = vmatpush.msra.mxu0 0.0
        %457 = vmatpush.msra.mxu0 0.0
        %458 = vmatpush.msra.mxu0 0.0
        %459 = vmatpush.msra.mxu0 0.0
        %460 = vmatpush.msra.mxu0 0.0
        %461 = vmatpush.msra.mxu0 0.0
        %462 = vmatpush.msra.mxu0 %v447
        %463 = vmatpush.msra.mxu0 %v446
        %464 = vmatpush.msra.mxu0 %v445
        %465 = vmatpush.msra.mxu0 %v444
        %466 = vmatmul.f32.gmra.mxu0 %v394
        %v467 = vpop.f32.mrf.mxu0
        %v468 = vadd.f32 %v449, %v467
        %469 = vdwg.mxu0
        %vm470 = vcmask 130048
        %v472 = vsel %vm470, %v414, 0
        %v475 = vsel %vm470, %v441, 0
        %477 = vmatpush.xpose.msra.mxu0 0.0
        %478 = vmatpush.xpose.msra.mxu0 0.0
        %479 = vmatpush.xpose.msra.mxu0 0.0
        %480 = vmatpush.xpose.msra.mxu0 0.0
        %481 = vmatpush.xpose.msra.mxu0 0.0
        %482 = vmatpush.xpose.msra.mxu0 0.0
        %483 = vmatpush.xpose.msra.mxu0 0.0
        %484 = vmatpush.xpose.msra.mxu0 0.0
        %485 = vmatpush.xpose.msra.mxu0 0.0
        %486 = vmatpush.xpose.msra.mxu0 0.0
        %487 = vmatpush.xpose.msra.mxu0 0.0
        %488 = vmatpush.xpose.msra.mxu0 0.0
        %489 = vmatpush.xpose.msra.mxu0 0.0
        %490 = vmatpush.xpose.msra.mxu0 0.0
        %491 = vmatpush.xpose.msra.mxu0 0.0
        %492 = vmatpush.xpose.msra.mxu0 %v475
        %493 = vmatmul.f32.gmra.mxu0 %v472
        %v494 = vpop.f32.mrf.mxu0
        %v495 = vadd.f32 0.0, %v494
        %496 = vdwg.mxu0
        %v497 = vmul.f32 %v495, 0.25
        %v499 = vperm.slane %v386, 0
        %v501 = vadd.f32 %v497, %v499
        %vm502 = vcmask 64512
        %v503 = vsel %vm502, %v501, -inf
        %504 = vmax.xlane.f32.xlu0 %v503
        %v505 = vpop.xlane.xlu0 %504
        %v506 = vsub.f32 %v501, %v505
        %v507 = vmul.f32 %v506, 1.442695
        %v508 = vpow.pop %v507
        %v509 = vsel %vm502, %v508, 0.0
        %510 = vadd.xlane.f32.xlu0 %v509
        %v511 = vpop.xlane.xlu0 %510
        %v512 = vrcp.pop %v511
        %v513 = vmul.f32 %v508, %v512
        %v515 = vsel %vm502, %v513, 0
        %517 = vmatpush.msra.mxu0 0.0
        %518 = vmatpush.msra.mxu0 0.0
        %519 = vmatpush.msra.mxu0 0.0
        %520 = vmatpush.msra.mxu0 0.0
        %521 = vmatpush.msra.mxu0 0.0
        %522 = vmatpush.msra.mxu0 0.0
        %523 = vmatpush.msra.mxu0 0.0
        %524 = vmatpush.msra.mxu0 0.0
        %525 = vmatpush.msra.mxu0 0.0
        %526 = vmatpush.msra.mxu0 0.0
        %527 = vmatpush.msra.mxu0 0.0
        %528 = vmatpush.msra.mxu0 0.0
        %529 = vmatpush.msra.mxu0 0.0
        %530 = vmatpush.msra.mxu0 0.0
        %531 = vmatpush.msra.mxu0 0.0
        %532 = vmatpush.msra.mxu0 %v468
        %533 = vmatmul.f32.gmra.mxu0 %v515
        %v534 = vpop.f32.mrf.mxu0
        %v535 = vadd.f32 0.0, %v534
        %536 = vdwg.mxu0
        %s537 = scalar_lea.vmem [#allocation2], 120
        %v538 = vld [vmem:[%s537] sm:$0xff]
        %v539 = vld [vmem:[%s537 + $0x8] sm:$0xff]
        %v540 = vld [vmem:[%s537 + $0x10] sm:$0xff]
        %v541 = vld [vmem:[%s537 + $0x18] sm:$0xff]
        %v542 = vld [vmem:[%s537 + $0x20] sm:$0x1]
        %v543 = vperm.slane %v542, 0
        %544 = vmatpush.msra.mxu0 0.0
        %545 = vmatpush.msra.mxu0 0.0
        %546 = vmatpush.msra.mxu0 0.0
        %547 = vmatpush.msra.mxu0 0.0
        %548 = vmatpush.msra.mxu0 0.0
        %549 = vmatpush.msra.mxu0 0.0
        %550 = vmatpush.msra.mxu0 0.0
        %551 = vmatpush.msra.mxu0 0.0
        %552 = vmatpush.msra.mxu0 0.0
        %553 = vmatpush.msra.mxu0 0.0
        %554 = vmatpush.msra.mxu0 0.0
        %555 = vmatpush.msra.mxu0 0.0
        %556 = vmatpush.msra.mxu0 %v541
        %557 = vmatpush.msra.mxu0 %v540
        %558 = vmatpush.msra.mxu0 %v539
        %559 = vmatpush.msra.mxu0 %v538
        %560 = vmatmul.f32.gmra.mxu0 %v394
        %v561 = vpop.f32.mrf.mxu0
        %v562 = vadd.f32 %v543, %v561
        %563 = vdwg.mxu0
        %s564 = scalar_lea.vmem [#allocation2], 160
        %v565 = vld [vmem:[%s564] sm:$0xff]
        %v566 = vld [vmem:[%s564 + $0x8] sm:$0xff]
        %v567 = vld [vmem:[%s564 + $0x10] sm:$0xff]
        %v568 = vld [vmem:[%s564 + $0x18] sm:$0xff]
        %v569 = vld [vmem:[%s564 + $0x20] sm:$0x1]
        %v570 = vperm.slane %v569, 0
        %571 = vmatpush.msra.mxu0 0.0
        %572 = vmatpush.msra.mxu0 0.0
        %573 = vmatpush.msra.mxu0 0.0
        %574 = vmatpush.msra.mxu0 0.0
        %575 = vmatpush.msra.mxu0 0.0
        %576 = vmatpush.msra.mxu0 0.0
        %577 = vmatpush.msra.mxu0 0.0
        %578 = vmatpush.msra.mxu0 0.0
        %579 = vmatpush.msra.mxu0 0.0
        %580 = vmatpush.msra.mxu0 0.0
        %581 = vmatpush.msra.mxu0 0.0
        %582 = vmatpush.msra.mxu0 0.0
        %583 = vmatpush.msra.mxu0 %v568
        %584 = vmatpush.msra.mxu0 %v567
        %585 = vmatpush.msra.mxu0 %v566
        %586 = vmatpush.msra.mxu0 %v565
        %587 = vmatmul.f32.gmra.mxu0 %v394
        %v588 = vpop.f32.mrf.mxu0
        %v589 = vadd.f32 %v570, %v588
        %590 = vdwg.mxu0
        %s591 = scalar_lea.vmem [#allocation2], 200
        %v592 = vld [vmem:[%s591] sm:$0xff]
        %v593 = vld [vmem:[%s591 + $0x8] sm:$0xff]
        %v594 = vld [vmem:[%s591 + $0x10] sm:$0xff]
        %v595 = vld [vmem:[%s591 + $0x18] sm:$0xff]
        %v596 = vld [vmem:[%s591 + $0x20] sm:$0x1]
        %v597 = vperm.slane %v596, 0
        %598 = vmatpush.msra.mxu0 0.0
        %599 = vmatpush.msra.mxu0 0.0
        %600 = vmatpush.msra.mxu0 0.0
        %601 = vmatpush.msra.mxu0 0.0
        %602 = vmatpush.msra.mxu0 0.0
        %603 = vmatpush.msra.mxu0 0.0
        %604 = vmatpush.msra.mxu0 0.0
        %605 = vmatpush.msra.mxu0 0.0
        %606 = vmatpush.msra.mxu0 0.0
        %607 = vmatpush.msra.mxu0 0.0
        %608 = vmatpush.msra.mxu0 0.0
        %609 = vmatpush.msra.mxu0 0.0
        %610 = vmatpush.msra.mxu0 %v595
        %611 = vmatpush.msra.mxu0 %v594
        %612 = vmatpush.msra.mxu0 %v593
        %613 = vmatpush.msra.mxu0 %v592
        %614 = vmatmul.f32.gmra.mxu0 %v394
        %v615 = vpop.f32.mrf.mxu0
        %v616 = vadd.f32 %v597, %v615
        %617 = vdwg.mxu0
        %v619 = vsel %vm470, %v562, 0
        %v622 = vsel %vm470, %v589, 0
        %624 = vmatpush.xpose.msra.mxu0 0.0
        %625 = vmatpush.xpose.msra.mxu0 0.0
        %626 = vmatpush.xpose.msra.mxu0 0.0
        %627 = vmatpush.xpose.msra.mxu0 0.0
        %628 = vmatpush.xpose.msra.mxu0 0.0
        %629 = vmatpush.xpose.msra.mxu0 0.0
        %630 = vmatpush.xpose.msra.mxu0 0.0
        %631 = vmatpush.xpose.msra.mxu0 0.0
        %632 = vmatpush.xpose.msra.mxu0 0.0
        %633 = vmatpush.xpose.msra.mxu0 0.0
        %634 = vmatpush.xpose.msra.mxu0 0.0
        %635 = vmatpush.xpose.msra.mxu0 0.0
        %636 = vmatpush.xpose.msra.mxu0 0.0
        %637 = vmatpush.xpose.msra.mxu0 0.0
        %638 = vmatpush.xpose.msra.mxu0 0.0
        %639 = vmatpush.xpose.msra.mxu0 %v622
        %640 = vmatmul.f32.gmra.mxu0 %v619
        %v641 = vpop.f32.mrf.mxu0
        %v642 = vadd.f32 0.0, %v641
        %643 = vdwg.mxu0
        %v644 = vmul.f32 %v642, 0.25
        %v645 = vadd.f32 %v644, %v499
        %v646 = vsel %vm502, %v645, -inf
        %647 = vmax.xlane.f32.xlu0 %v646
        %v648 = vpop.xlane.xlu0 %647
        %v649 = vsub.f32 %v645, %v648
        %v650 = vmul.f32 %v649, 1.442695
        %v651 = vpow.pop %v650
        %v652 = vsel %vm502, %v651, 0.0
        %653 = vadd.xlane.f32.xlu0 %v652
        %v654 = vpop.xlane.xlu0 %653
        %v655 = vrcp.pop %v654
        %v656 = vmul.f32 %v651, %v655
        %v658 = vsel %vm502, %v656, 0
        %660 = vmatpush.msra.mxu0 0.0
        %661 = vmatpush.msra.mxu0 0.0
        %662 = vmatpush.msra.mxu0 0.0
        %663 = vmatpush.msra.mxu0 0.0
        %664 = vmatpush.msra.mxu0 0.0
        %665 = vmatpush.msra.mxu0 0.0
        %666 = vmatpush.msra.mxu0 0.0
        %667 = vmatpush.msra.mxu0 0.0
        %668 = vmatpush.msra.mxu0 0.0
        %669 = vmatpush.msra.mxu0 0.0
        %670 = vmatpush.msra.mxu0 0.0
        %671 = vmatpush.msra.mxu0 0.0
        %672 = vmatpush.msra.mxu0 0.0
        %673 = vmatpush.msra.mxu0 0.0
        %674 = vmatpush.msra.mxu0 0.0
        %675 = vmatpush.msra.mxu0 %v616
        %676 = vmatmul.f32.gmra.mxu0 %v658
        %v677 = vpop.f32.mrf.mxu0
        %v678 = vadd.f32 0.0, %v677
        %679 = vdwg.mxu0
        %681 = vrot.lane.b32.xlu0 %v678, 16
        %v682 = vpop.permute.xlu0 %681
        %v684 = vsel %vm470, %v535, %v682
        %v685 = vld [vmem:[%s3] sm:$0xff]
        %v686 = vld [vmem:[%s3 + $0x8] sm:$0xff]
        %v687 = vld [vmem:[%s3 + $0x10] sm:$0xff]
        %v688 = vld [vmem:[%s3 + $0x18] sm:$0xff]
        %v689 = vld [vmem:[%s3 + $0x20] sm:$0x1]
        %v690 = vperm.slane %v689, 0
        %v692 = vsel %vm352, %v684, 0
        %694 = vmatpush.msra.mxu0 0.0
        %695 = vmatpush.msra.mxu0 0.0
        %696 = vmatpush.msra.mxu0 0.0
        %697 = vmatpush.msra.mxu0 0.0
        %698 = vmatpush.msra.mxu0 0.0
        %699 = vmatpush.msra.mxu0 0.0
        %700 = vmatpush.msra.mxu0 0.0
        %701 = vmatpush.msra.mxu0 0.0
        %702 = vmatpush.msra.mxu0 0.0
        %703 = vmatpush.msra.mxu0 0.0
        %704 = vmatpush.msra.mxu0 0.0
        %705 = vmatpush.msra.mxu0 0.0
        %706 = vmatpush.msra.mxu0 %v688
        %707 = vmatpush.msra.mxu0 %v687
        %708 = vmatpush.msra.mxu0 %v686
        %709 = vmatpush.msra.mxu0 %v685
        %710 = vmatmul.f32.gmra.mxu0 %v692
        %v711 = vpop.f32.mrf.mxu0
        %v712 = vadd.f32 %v690, %v711
        %713 = vdwg.mxu0
        %v714 = vadd.f32 %v385, %v712
        %v715 = vld [vmem:[%s6 + $0x2] sm:$0x1]
        %v716 = vld [vmem:[%s6 + $0x3] sm:$0x1]
        %v717 = vsel %vm352, %v714, 0.0
        %718 = vadd.xlane.f32.xlu0 %v717
        %v719 = vpop.xlane.xlu0 %718
        %v720 = vmul.f32 %v719, %v362
        %v721 = vsub.f32 %v714, %v720
        %v722 = vmul.f32 %v721, %v721
        %v723 = vsel %vm352, %v722, 0.0
        %724 = vadd.xlane.f32.xlu0 %v723
        %v725 = vpop.xlane.xlu0 %724
        %v726 = vmul.f32 %v725, %v362
        %v727 = vadd.f32 %v726, 1e-12
        %v728 = vrsqrt.pop %v727
        %v729 = vmul.f32 %v728, %v727
        %v730 = vmul.f32 %v729, %v728
        %v731 = vmul.f32 0.5, %v730
        %v732 = vsub.f32 1.5, %v731
        %v733 = vmul.f32 %v728, %v732
        %vm734 = vweird.f32 %v727
        %vm735 = vweird.f32 %v728
        %vm736 = vmor %vm734, %vm735
        %v737 = vsel %vm736, %v728, %v733
        %v738 = vmul.f32 %v721, %v737
        %v739 = vperm.slane %v715, 0
        %v740 = vmul.f32 %v738, %v739
        %v741 = vperm.slane %v716, 0
        %v742 = vadd.f32 %v740, %v741
        %v743 = vld [vmem:[%s4] sm:$0xff]
        %v744 = vld [vmem:[%s4 + $0x8] sm:$0xff]
        %v745 = vld [vmem:[%s4 + $0x10] sm:$0xff]
        %v746 = vld [vmem:[%s4 + $0x18] sm:$0xff]
        %v747 = vld [vmem:[%s4 + $0x20] sm:$0x1]
        %v748 = vperm.slane %v747, 0
        %v750 = vsel %vm352, %v742, 0
        %752 = vmatpush.msra.mxu0 0.0
        %753 = vmatpush.msra.mxu0 0.0
        %754 = vmatpush.msra.mxu0 0.0
        %755 = vmatpush.msra.mxu0 0.0
        %756 = vmatpush.msra.mxu0 0.0
        %757 = vmatpush.msra.mxu0 0.0
        %758 = vmatpush.msra.mxu0 0.0
        %759 = vmatpush.msra.mxu0 0.0
        %760 = vmatpush.msra.mxu0 0.0
        %761 = vmatpush.msra.mxu0 0.0
        %762 = vmatpush.msra.mxu0 0.0
        %763 = vmatpush.msra.mxu0 0.0
        %764 = vmatpush.msra.mxu0 %v746
        %765 = vmatpush.msra.mxu0 %v745
        %766 = vmatpush.msra.mxu0 %v744
        %767 = vmatpush.msra.mxu0 %v743
        %768 = vmatmul.f32.gmra.mxu0 %v750
        %v769 = vpop.f32.mrf.mxu0
        %v770 = vadd.f32 %v748, %v769
        %771 = vdwg.mxu0
        %v772 = vmul.f32 %v770, 0.5
        %v773 = vmul.f32 %v770, 0.044715
        %v774 = vmul.f32 %v773, %v770
        %v775 = vmul.f32 %v774, %v770
        %v776 = vadd.f32 %v770, %v775
        %v777 = vmul.f32 %v776, 0.7978846
        %v778 = vtanh.pop %v777
        %v779 = vadd.f32 %v778, 1.0
        %v780 = vmul.f32 %v772, %v779
        %v781 = vld [vmem:[%s5] sm:$0xff]
        %v782 = vld [vmem:[%s5 + $0x8] sm:$0xff]
        %v783 = vld [vmem:[%s5 + $0x10] sm:$0xff]
        %v784 = vld [vmem:[%s5 + $0x18] sm:$0xff]
        %v785 = vld [vmem:[%s5 + $0x20] sm:$0xff]
        %v786 = vld [vmem:[%s5 + $0x28] sm:$0xff]
        %v787 = vld [vmem:[%s5 + $0x30] sm:$0xff]
        %v788 = vld [vmem:[%s5 + $0x38] sm:$0xff]
        %v789 = vld [vmem:[%s5 + $0x40] sm:$0x1]
        %v790 = vperm.slane %v789, 0
        %vm791 = vcmask 523264
        %v793 = vsel %vm791, %v780, 0
        %795 = vmatpush.msra.mxu0 0.0
        %796 = vmatpush.msra.mxu0 0.0
        %797 = vmatpush.msra.mxu0 0.0
        %798 = vmatpush.msra.mxu0 0.0
        %799 = vmatpush.msra.mxu0 0.0
        %800 = vmatpush.msra.mxu0 0.0
        %801 = vmatpush.msra.mxu0 0.0
        %802 = vmatpush.msra.mxu0 0.0
        %803 = vmatpush.msra.mxu0 %v788
        %804 = vmatpush.msra.mxu0 %v787
        %805 = vmatpush.msra.mxu0 %v786
        %806 = vmatpush.msra.mxu0 %v785
        %807 = vmatpush.msra.mxu0 %v784
        %808 = vmatpush.msra.mxu0 %v783
        %809 = vmatpush.msra.mxu0 %v782
        %810 = vmatpush.msra.mxu0 %v781
        %811 = vmatmul.f32.gmra.mxu0 %v793
        %v812 = vpop.f32.mrf.mxu0
        %v813 = vadd.f32 %v790, %v812
        %814 = vdwg.mxu0
        %v815 = vadd.f32 %v742, %v813
        %v816 = vld [vmem:[%s6 + $0x4] sm:$0x1]
        %v817 = vld [vmem:[%s6 + $0x5] sm:$0x1]
        %v818 = vsel %vm352, %v815, 0.0
        %819 = vadd.xlane.f32.xlu0 %v818
        %v820 = vpop.xlane.xlu0 %819
        %v821 = vmul.f32 %v820, %v362
        %v822 = vsub.f32 %v815, %v821
        %v823 = vmul.f32 %v822, %v822
        %v824 = vsel %vm352, %v823, 0.0
        %825 = vadd.xlane.f32.xlu0 %v824
        %v826 = vpop.xlane.xlu0 %825
        %v827 = vmul.f32 %v826, %v362
        %v828 = vadd.f32 %v827, 1e-12
        %v829 = vrsqrt.pop %v828
        %v830 = vmul.f32 %v829, %v828
        %v831 = vmul.f32 %v830, %v829
        %v832 = vmul.f32 0.5, %v831
        %v833 = vsub.f32 1.5, %v832
        %v834 = vmul.f32 %v829, %v833
        %vm835 = vweird.f32 %v828
        %vm836 = vweird.f32 %v829
        %vm837 = vmor %vm835, %vm836
        %v838 = vsel %vm837, %v829, %v834
        %v839 = vmul.f32 %v822, %v838
        %v840 = vperm.slane %v816, 0
        %v841 = vmul.f32 %v839, %v840
        %v842 = vperm.slane %v817, 0
        %v843 = vadd.f32 %v841, %v842
        %s844 = scalar_lea.vmem [#allocation2], 240
        %v845 = vld [vmem:[%s844] sm:$0xff]
        %v846 = vld [vmem:[%s844 + $0x8] sm:$0xff]
        %v847 = vld [vmem:[%s844 + $0x10] sm:$0xff]
        %v848 = vld [vmem:[%s844 + $0x18] sm:$0xff]
        %v849 = vld [vmem:[%s844 + $0x20] sm:$0x1]
        %v850 = vperm.slane %v849, 0
        %v852 = vsel %vm352, %v843, 0
        %854 = vmatpush.msra.mxu0 0.0
        %855 = vmatpush.msra.mxu0 0.0
        %856 = vmatpush.msra.mxu0 0.0
        %857 = vmatpush.msra.mxu0 0.0
        %858 = vmatpush.msra.mxu0 0.0
        %859 = vmatpush.msra.mxu0 0.0
        %860 = vmatpush.msra.mxu0 0.0
        %861 = vmatpush.msra.mxu0 0.0
        %862 = vmatpush.msra.mxu0 0.0
        %863 = vmatpush.msra.mxu0 0.0
        %864 = vmatpush.msra.mxu0 0.0
        %865 = vmatpush.msra.mxu0 0.0
        %866 = vmatpush.msra.mxu0 %v848
        %867 = vmatpush.msra.mxu0 %v847
        %868 = vmatpush.msra.mxu0 %v846
        %869 = vmatpush.msra.mxu0 %v845
        %870 = vmatmul.f32.gmra.mxu0 %v852
        %v871 = vpop.f32.mrf.mxu0
        %v872 = vadd.f32 %v850, %v871
        %873 = vdwg.mxu0
        %s874 = scalar_lea.vmem [#allocation2], 280
        %v875 = vld [vmem:[%s874] sm:$0xff]
        %v876 = vld [vmem:[%s874 + $0x8] sm:$0xff]
        %v877 = vld [vmem:[%s874 + $0x10] sm:$0xff]
        %v878 = vld [vmem:[%s874 + $0x18] sm:$0xff]
        %v879 = vld [vmem:[%s874 + $0x20] sm:$0x1]
        %v880 = vperm.slane %v879, 0
        %881 = vmatpush.msra.mxu0 0.0
        %882 = vmatpush.msra.mxu0 0.0
        %883 = vmatpush.msra.mxu0 0.0
        %884 = vmatpush.msra.mxu0 0.0
        %885 = vmatpush.msra.mxu0 0.0
        %886 = vmatpush.msra.mxu0 0.0
        %887 = vmatpush.msra.mxu0 0.0
        %888 = vmatpush.msra.mxu0 0.0
        %889 = vmatpush.msra.mxu0 0.0
        %890 = vmatpush.msra.mxu0 0.0
        %891 = vmatpush.msra.mxu0 0.0
        %892 = vmatpush.msra.mxu0 0.0
        %893 = vmatpush.msra.mxu0 %v878
        %894 = vmatpush.msra.mxu0 %v877
        %895 = vmatpush.msra.mxu0 %v876
        %896 = vmatpush.msra.mxu0 %v875
        %897 = vmatmul.f32.gmra.mxu0 %v852
        %v898 = vpop.f32.mrf.mxu0
        %v899 = vadd.f32 %v880, %v898
        %900 = vdwg.mxu0
        %s901 = scalar_lea.vmem [#allocation2], 320
        %v902 = vld [vmem:[%s901] sm:$0xff]
        %v903 = vld [vmem:[%s901 + $0x8] sm:$0xff]
        %v904 = vld [vmem:[%s901 + $0x10] sm:$0xff]
        %v905 = vld [vmem:[%s901 + $0x18] sm:$0xff]
        %v906 = vld [vmem:[%s901 + $0x20] sm:$0x1]
        %v907 = vperm.slane %v906, 0
        %908 = vmatpush.msra.mxu0 0.0
        %909 = vmatpush.msra.mxu0 0.0
        %910 = vmatpush.msra.mxu0 0.0
        %911 = vmatpush.msra.mxu0 0.0
        %912 = vmatpush.msra.mxu0 0.0
        %913 = vmatpush.msra.mxu0 0.0
        %914 = vmatpush.msra.mxu0 0.0
        %915 = vmatpush.msra.mxu0 0.0
        %916 = vmatpush.msra.mxu0 0.0
        %917 = vmatpush.msra.mxu0 0.0
        %918 = vmatpush.msra.mxu0 0.0
        %919 = vmatpush.msra.mxu0 0.0
        %920 = vmatpush.msra.mxu0 %v905
        %921 = vmatpush.msra.mxu0 %v904
        %922 = vmatpush.msra.mxu0 %v903
        %923 = vmatpush.msra.mxu0 %v902
        %924 = vmatmul.f32.gmra.mxu0 %v852
        %v925 = vpop.f32.mrf.mxu0
        %v926 = vadd.f32 %v907, %v925
        %927 = vdwg.mxu0
        %v929 = vsel %vm470, %v872, 0
        %v932 = vsel %vm470, %v899, 0
        %934 = vmatpush.xpose.msra.mxu0 0.0
        %935 = vmatpush.xpose.msra.mxu0 0.0
        %936 = vmatpush.xpose.msra.mxu0 0.0
        %937 = vmatpush.xpose.msra.mxu0 0.0
        %938 = vmatpush.xpose.msra.mxu0 0.0
        %939 = vmatpush.xpose.msra.mxu0 0.0
        %940 = vmatpush.xpose.msra.mxu0 0.0
        %941 = vmatpush.xpose.msra.mxu0 0.0
        %942 = vmatpush.xpose.msra.mxu0 0.0
        %943 = vmatpush.xpose.msra.mxu0 0.0
        %944 = vmatpush.xpose.msra.mxu0 0.0
        %945 = vmatpush.xpose.msra.mxu0 0.0
        %946 = vmatpush.xpose.msra.mxu0 0.0
        %947 = vmatpush.xpose.msra.mxu0 0.0
        %948 = vmatpush.xpose.msra.mxu0 0.0
        %949 = vmatpush.xpose.msra.mxu0 %v932
        %950 = vmatmul.f32.gmra.mxu0 %v929
        %v951 = vpop.f32.mrf.mxu0
        %v952 = vadd.f32 0.0, %v951
        %953 = vdwg.mxu0
        %v954 = vmul.f32 %v952, 0.25
        %v955 = vadd.f32 %v954, %v499
        %v956 = vsel %vm502, %v955, -inf
        %957 = vmax.xlane.f32.xlu0 %v956
        %v958 = vpop.xlane.xlu0 %957
        %v959 = vsub.f32 %v955, %v958
        %v960 = vmul.f32 %v959, 1.442695
        %v961 = vpow.pop %v960
        %v962 = vsel %vm502, %v961, 0.0
        %963 = vadd.xlane.f32.xlu0 %v962
        %v964 = vpop.xlane.xlu0 %963
        %v965 = vrcp.pop %v964
        %v966 = vmul.f32 %v961, %v965
        %v968 = vsel %vm502, %v966, 0
        %970 = vmatpush.msra.mxu0 0.0
        %971 = vmatpush.msra.mxu0 0.0
        %972 = vmatpush.msra.mxu0 0.0
        %973 = vmatpush.msra.mxu0 0.0
        %974 = vmatpush.msra.mxu0 0.0
        %975 = vmatpush.msra.mxu0 0.0
        %976 = vmatpush.msra.mxu0 0.0
        %977 = vmatpush.msra.mxu0 0.0
        %978 = vmatpush.msra.mxu0 0.0
        %979 = vmatpush.msra.mxu0 0.0
        %980 = vmatpush.msra.mxu0 0.0
        %981 = vmatpush.msra.mxu0 0.0
        %982 = vmatpush.msra.mxu0 0.0
        %983 = vmatpush.msra.mxu0 0.0
        %984 = vmatpush.msra.mxu0 0.0
        %985 = vmatpush.msra.mxu0 %v926
        %986 = vmatmul.f32.gmra.mxu0 %v968
        %v987 = vpop.f32.mrf.mxu0
        %v988 = vadd.f32 0.0, %v987
        %989 = vdwg.mxu0
        %s990 = scalar_lea.vmem [#allocation2], 360
        %v991 = vld [vmem:[%s990] sm:$0xff]
        %v992 = vld [vmem:[%s990 + $0x8] sm:$0xff]
        %v993 = vld [vmem:[%s990 + $0x10] sm:$0xff]
        %v994 = vld [vmem:[%s990 + $0x18] sm:$0xff]
        %v995 = vld [vmem:[%s990 + $0x20] sm:$0x1]
        %v996 = vperm.slane %v995, 0
        %997 = vmatpush.msra.mxu0 0.0
        %998 = vmatpush.msra.mxu0 0.0
        %999 = vmatpush.msra.mxu0 0.0
        %1000 = vmatpush.msra.mxu0 0.0
        %1001 = vmatpush.msra.mxu0 0.0
        %1002 = vmatpush.msra.mxu0 0.0
        %1003 = vmatpush.msra.mxu0 0.0
        %1004 = vmatpush.msra.mxu0 0.0
        %1005 = vmatpush.msra.mxu0 0.0
        %1006 = vmatpush.msra.mxu0 0.0
        %1007 = vmatpush.msra.mxu0 0.0
        %1008 = vmatpush.msra.mxu0 0.0
        %1009 = vmatpush.msra.mxu0 %v994
        %1010 = vmatpush.msra.mxu0 %v993
        %1011 = vmatpush.msra.mxu0 %v992
        %1012 = vmatpush.msra.mxu0 %v991
        %1013 = vmatmul.f32.gmra.mxu0 %v852
        %v1014 = vpop.f32.mrf.mxu0
        %v1015 = vadd.f32 %v996, %v1014
        %1016 = vdwg.mxu0
        %s1017 = scalar_lea.vmem [#allocation2], 400
        %v1018 = vld [vmem:[%s1017] sm:$0xff]
        %v1019 = vld [vmem:[%s1017 + $0x8] sm:$0xff]
        %v1020 = vld [vmem:[%s1017 + $0x10] sm:$0xff]
        %v1021 = vld [vmem:[%s1017 + $0x18] sm:$0xff]
        %v1022 = vld [vmem:[%s1017 + $0x20] sm:$0x1]
        %v1023 = vperm.slane %v1022, 0
        %1024 = vmatpush.msra.mxu0 0.0
        %1025 = vmatpush.msra.mxu0 0.0
        %1026 = vmatpush.msra.mxu0 0.0
        %1027 = vmatpush.msra.mxu0 0.0
        %1028 = vmatpush.msra.mxu0 0.0
        %1029 = vmatpush.msra.mxu0 0.0
        %1030 = vmatpush.msra.mxu0 0.0
        %1031 = vmatpush.msra.mxu0 0.0
        %1032 = vmatpush.msra.mxu0 0.0
        %1033 = vmatpush.msra.mxu0 0.0
        %1034 = vmatpush.msra.mxu0 0.0
        %1035 = vmatpush.msra.mxu0 0.0
        %1036 = vmatpush.msra.mxu0 %v1021
        %1037 = vmatpush.msra.mxu0 %v1020
        %1038 = vmatpush.msra.mxu0 %v1019
        %1039 = vmatpush.msra.mxu0 %v1018
        %1040 = vmatmul.f32.gmra.mxu0 %v852
        %v1041 = vpop.f32.mrf.mxu0
        %v1042 = vadd.f32 %v1023, %v1041
        %1043 = vdwg.mxu0
        %s1044 = scalar_lea.vmem [#allocation2], 440
        %v1045 = vld [vmem:[%s1044] sm:$0xff]
        %v1046 = vld [vmem:[%s1044 + $0x8] sm:$0xff]
        %v1047 = vld [vmem:[%s1044 + $0x10] sm:$0xff]
        %v1048 = vld [vmem:[%s1044 + $0x18] sm:$0xff]
        %v1049 = vld [vmem:[%s1044 + $0x20] sm:$0x1]
        %v1050 = vperm.slane %v1049, 0
        %1051 = vmatpush.msra.mxu0 0.0
        %1052 = vmatpush.msra.mxu0 0.0
        %1053 = vmatpush.msra.mxu0 0.0
        %1054 = vmatpush.msra.mxu0 0.0
        %1055 = vmatpush.msra.mxu0 0.0
        %1056 = vmatpush.msra.mxu0 0.0
        %1057 = vmatpush.msra.mxu0 0.0
        %1058 = vmatpush.msra.mxu0 0.0
        %1059 = vmatpush.msra.mxu0 0.0
        %1060 = vmatpush.msra.mxu0 0.0
        %1061 = vmatpush.msra.mxu0 0.0
        %1062 = vmatpush.msra.mxu0 0.0
        %1063 = vmatpush.msra.mxu0 %v1048
        %1064 = vmatpush.msra.mxu0 %v1047
        %1065 = vmatpush.msra.mxu0 %v1046
        %1066 = vmatpush.msra.mxu0 %v1045
        %1067 = vmatmul.f32.gmra.mxu0 %v852
        %v1068 = vpop.f32.mrf.mxu0
        %v1069 = vadd.f32 %v1050, %v1068
        %1070 = vdwg.mxu0
        %v1072 = vsel %vm470, %v1015, 0
        %v1075 = vsel %vm470, %v1042, 0
        %1077 = vmatpush.xpose.msra.mxu0 0.0
        %1078 = vmatpush.xpose.msra.mxu0 0.0
        %1079 = vmatpush.xpose.msra.mxu0 0.0
        %1080 = vmatpush.xpose.msra.mxu0 0.0
        %1081 = vmatpush.xpose.msra.mxu0 0.0
        %1082 = vmatpush.xpose.msra.mxu0 0.0
        %1083 = vmatpush.xpose.msra.mxu0 0.0
        %1084 = vmatpush.xpose.msra.mxu0 0.0
        %1085 = vmatpush.xpose.msra.mxu0 0.0
        %1086 = vmatpush.xpose.msra.mxu0 0.0
        %1087 = vmatpush.xpose.msra.mxu0 0.0
        %1088 = vmatpush.xpose.msra.mxu0 0.0
        %1089 = vmatpush.xpose.msra.mxu0 0.0
        %1090 = vmatpush.xpose.msra.mxu0 0.0
        %1091 = vmatpush.xpose.msra.mxu0 0.0
        %1092 = vmatpush.xpose.msra.mxu0 %v1075
        %1093 = vmatmul.f32.gmra.mxu0 %v1072
        %v1094 = vpop.f32.mrf.mxu0
        %v1095 = vadd.f32 0.0, %v1094
        %1096 = vdwg.mxu0
        %v1097 = vmul.f32 %v1095, 0.25
        %v1098 = vadd.f32 %v1097, %v499
        %v1099 = vsel %vm502, %v1098, -inf
        %1100 = vmax.xlane.f32.xlu0 %v1099
        %v1101 = vpop.xlane.xlu0 %1100
        %v1102 = vsub.f32 %v1098, %v1101
        %v1103 = vmul.f32 %v1102, 1.442695
        %v1104 = vpow.pop %v1103
        %v1105 = vsel %vm502, %v1104, 0.0
        %1106 = vadd.xlane.f32.xlu0 %v1105
        %v1107 = vpop.xlane.xlu0 %1106
        %v1108 = vrcp.pop %v1107
        %v1109 = vmul.f32 %v1104, %v1108
        %v1111 = vsel %vm502, %v1109, 0
        %1113 = vmatpush.msra.mxu0 0.0
        %1114 = vmatpush.msra.mxu0 0.0
        %1115 = vmatpush.msra.mxu0 0.0
        %1116 = vmatpush.msra.mxu0 0.0
        %1117 = vmatpush.msra.mxu0 0.0
        %1118 = vmatpush.msra.mxu0 0.0
        %1119 = vmatpush.msra.mxu0 0.0
        %1120 = vmatpush.msra.mxu0 0.0
        %1121 = vmatpush.msra.mxu0 0.0
        %1122 = vmatpush.msra.mxu0 0.0
        %1123 = vmatpush.msra.mxu0 0.0
        %1124 = vmatpush.msra.mxu0 0.0
        %1125 = vmatpush.msra.mxu0 0.0
        %1126 = vmatpush.msra.mxu0 0.0
        %1127 = vmatpush.msra.mxu0 0.0
        %1128 = vmatpush.msra.mxu0 %v1069
        %1129 = vmatmul.f32.gmra.mxu0 %v1111
        %v1130 = vpop.f32.mrf.mxu0
        %v1131 = vadd.f32 0.0, %v1130
        %1132 = vdwg.mxu0
        %1134 = vrot.lane.b32.xlu0 %v1131, 16
        %v1135 = vpop.permute.xlu0 %1134
        %v1137 = vsel %vm470, %v988, %v1135
        %s1138 = scalar_lea.vmem %s3, 40
        %v1139 = vld [vmem:[%s1138] sm:$0xff]
        %v1140 = vld [vmem:[%s1138 + $0x8] sm:$0xff]
        %v1141 = vld [vmem:[%s1138 + $0x10] sm:$0xff]
        %v1142 = vld [vmem:[%s1138 + $0x18] sm:$0xff]
        %v1143 = vld [vmem:[%s1138 + $0x20] sm:$0x1]
        %v1144 = vperm.slane %v1143, 0
        %v1146 = vsel %vm352, %v1137, 0
        %1148 = vmatpush.msra.mxu0 0.0
        %1149 = vmatpush.msra.mxu0 0.0
        %1150 = vmatpush.msra.mxu0 0.0
        %1151 = vmatpush.msra.mxu0 0.0
        %1152 = vmatpush.msra.mxu0 0.0
        %1153 = vmatpush.msra.mxu0 0.0
        %1154 = vmatpush.msra.mxu0 0.0
        %1155 = vmatpush.msra.mxu0 0.0
        %1156 = vmatpush.msra.mxu0 0.0
        %1157 = vmatpush.msra.mxu0 0.0
        %1158 = vmatpush.msra.mxu0 0.0
        %1159 = vmatpush.msra.mxu0 0.0
        %1160 = vmatpush.msra.mxu0 %v1142
        %1161 = vmatpush.msra.mxu0 %v1141
        %1162 = vmatpush.msra.mxu0 %v1140
        %1163 = vmatpush.msra.mxu0 %v1139
        %1164 = vmatmul.f32.gmra.mxu0 %v1146
        %v1165 = vpop.f32.mrf.mxu0
        %v1166 = vadd.f32 %v1144, %v1165
        %1167 = vdwg.mxu0
        %v1168 = vadd.f32 %v843, %v1166
        %v1169 = vld [vmem:[%s6 + $0x6] sm:$0x1]
        %v1170 = vld [vmem:[%s6 + $0x7] sm:$0x1]
        %v1171 = vsel %vm352, %v1168, 0.0
        %1172 = vadd.xlane.f32.xlu0 %v1171
        %v1173 = vpop.xlane.xlu0 %1172
        %v1174 = vmul.f32 %v1173, %v362
        %v1175 = vsub.f32 %v1168, %v1174
        %v1176 = vmul.f32 %v1175, %v1175
        %v1177 = vsel %vm352, %v1176, 0.0
        %1178 = vadd.xlane.f32.xlu0 %v1177
        %v1179 = vpop.xlane.xlu0 %1178
        %v1180 = vmul.f32 %v1179, %v362
        %v1181 = vadd.f32 %v1180, 1e-12
        %v1182 = vrsqrt.pop %v1181
        %v1183 = vmul.f32 %v1182, %v1181
        %v1184 = vmul.f32 %v1183, %v1182
        %v1185 = vmul.f32 0.5, %v1184
        %v1186 = vsub.f32 1.5, %v1185
        %v1187 = vmul.f32 %v1182, %v1186
        %vm1188 = vweird.f32 %v1181
        %vm1189 = vweird.f32 %v1182
        %vm1190 = vmor %vm1188, %vm1189
        %v1191 = vsel %vm1190, %v1182, %v1187
        %v1192 = vmul.f32 %v1175, %v1191
        %v1193 = vperm.slane %v1169, 0
        %v1194 = vmul.f32 %v1192, %v1193
        %v1195 = vperm.slane %v1170, 0
        %v1196 = vadd.f32 %v1194, %v1195
        %s1197 = scalar_lea.vmem %s4, 40
        %v1198 = vld [vmem:[%s1197] sm:$0xff]
        %v1199 = vld [vmem:[%s1197 + $0x8] sm:$0xff]
        %v1200 = vld [vmem:[%s1197 + $0x10] sm:$0xff]
        %v1201 = vld [vmem:[%s1197 + $0x18] sm:$0xff]
        %v1202 = vld [vmem:[%s1197 + $0x20] sm:$0x1]
        %v1203 = vperm.slane %v1202, 0
        %v1205 = vsel %vm352, %v1196, 0
        %1207 = vmatpush.msra.mxu0 0.0
        %1208 = vmatpush.msra.mxu0 0.0
        %1209 = vmatpush.msra.mxu0 0.0
        %1210 = vmatpush.msra.mxu0 0.0
        %1211 = vmatpush.msra.mxu0 0.0
        %1212 = vmatpush.msra.mxu0 0.0
        %1213 = vmatpush.msra.mxu0 0.0
        %1214 = vmatpush.msra.mxu0 0.0
        %1215 = vmatpush.msra.mxu0 0.0
        %1216 = vmatpush.msra.mxu0 0.0
        %1217 = vmatpush.msra.mxu0 0.0
        %1218 = vmatpush.msra.mxu0 0.0
        %1219 = vmatpush.msra.mxu0 %v1201
        %1220 = vmatpush.msra.mxu0 %v1200
        %1221 = vmatpush.msra.mxu0 %v1199
        %1222 = vmatpush.msra.mxu0 %v1198
        %1223 = vmatmul.f32.gmra.mxu0 %v1205
        %v1224 = vpop.f32.mrf.mxu0
        %v1225 = vadd.f32 %v1203, %v1224
        %1226 = vdwg.mxu0
        %v1227 = vmul.f32 %v1225, 0.5
        %v1228 = vmul.f32 %v1225, 0.044715
        %v1229 = vmul.f32 %v1228, %v1225
        %v1230 = vmul.f32 %v1229, %v1225
        %v1231 = vadd.f32 %v1225, %v1230
        %v1232 = vmul.f32 %v1231, 0.7978846
        %v1233 = vtanh.pop %v1232
        %v1234 = vadd.f32 %v1233, 1.0
        %v1235 = vmul.f32 %v1227, %v1234
        %s1236 = scalar_lea.vmem %s5, 72
        %v1237 = vld [vmem:[%s1236] sm:$0xff]
        %v1238 = vld [vmem:[%s1236 + $0x8] sm:$0xff]
        %v1239 = vld [vmem:[%s1236 + $0x10] sm:$0xff]
        %v1240 = vld [vmem:[%s1236 + $0x18] sm:$0xff]
        %v1241 = vld [vmem:[%s1236 + $0x20] sm:$0xff]
        %v1242 = vld [vmem:[%s1236 + $0x28] sm:$0xff]
        %v1243 = vld [vmem:[%s1236 + $0x30] sm:$0xff]
        %v1244 = vld [vmem:[%s1236 + $0x38] sm:$0xff]
        %v1245 = vld [vmem:[%s1236 + $0x40] sm:$0x1]
        %v1246 = vperm.slane %v1245, 0
        %v1248 = vsel %vm791, %v1235, 0
        %1250 = vmatpush.msra.mxu0 0.0
        %1251 = vmatpush.msra.mxu0 0.0
        %1252 = vmatpush.msra.mxu0 0.0
        %1253 = vmatpush.msra.mxu0 0.0
        %1254 = vmatpush.msra.mxu0 0.0
        %1255 = vmatpush.msra.mxu0 0.0
        %1256 = vmatpush.msra.mxu0 0.0
        %1257 = vmatpush.msra.mxu0 0.0
        %1258 = vmatpush.msra.mxu0 %v1244
        %1259 = vmatpush.msra.mxu0 %v1243
        %1260 = vmatpush.msra.mxu0 %v1242
        %1261 = vmatpush.msra.mxu0 %v1241
        %1262 = vmatpush.msra.mxu0 %v1240
        %1263 = vmatpush.msra.mxu0 %v1239
        %1264 = vmatpush.msra.mxu0 %v1238
        %1265 = vmatpush.msra.mxu0 %v1237
        %1266 = vmatmul.f32.gmra.mxu0 %v1248
        %v1267 = vpop.f32.mrf.mxu0
        %v1268 = vadd.f32 %v1246, %v1267
        %1269 = vdwg.mxu0
        %v1270 = vadd.f32 %v1196, %v1268
        %v1271 = vld [vmem:[%s6 + $0x8] sm:$0x1]
        %v1272 = vld [vmem:[%s6 + $0x9] sm:$0x1]
        %v1273 = vsel %vm352, %v1270, 0.0
        %1274 = vadd.xlane.f32.xlu0 %v1273
        %v1275 = vpop.xlane.xlu0 %1274
        %v1276 = vmul.f32 %v1275, %v362
        %v1277 = vsub.f32 %v1270, %v1276
        %v1278 = vmul.f32 %v1277, %v1277
        %v1279 = vsel %vm352, %v1278, 0.0
        %1280 = vadd.xlane.f32.xlu0 %v1279
        %v1281 = vpop.xlane.xlu0 %1280
        %v1282 = vmul.f32 %v1281, %v362
        %v1283 = vadd.f32 %v1282, 1e-12
        %v1284 = vrsqrt.pop %v1283
        %v1285 = vmul.f32 %v1284, %v1283
        %v1286 = vmul.f32 %v1285, %v1284
        %v1287 = vmul.f32 0.5, %v1286
        %v1288 = vsub.f32 1.5, %v1287
        %v1289 = vmul.f32 %v1284, %v1288
        %vm1290 = vweird.f32 %v1283
        %vm1291 = vweird.f32 %v1284
        %vm1292 = vmor %vm1290, %vm1291
        %v1293 = vsel %vm1292, %v1284, %v1289
        %v1294 = vmul.f32 %v1277, %v1293
        %v1295 = vperm.slane %v1271, 0
        %v1296 = vmul.f32 %v1294, %v1295
        %v1297 = vperm.slane %v1272, 0
        %v1298 = vadd.f32 %v1296, %v1297
        %v1299 = vld [vmem:[#allocation4] sm:$0xff]
        %v1300 = vld [vmem:[#allocation4 + $0x8] sm:$0xff]
        %v1301 = vld [vmem:[#allocation4 + $0x10] sm:$0xff]
        %v1302 = vld [vmem:[#allocation4 + $0x18] sm:$0xff]
        %v1303 = vld [vmem:[#allocation4 + $0x20] sm:$0x1]
        %v1304 = vperm.slane %v1303, 0
        %v1306 = vsel %vm352, %v1298, 0
        %1308 = vmatpush.msra.mxu0 0.0
        %1309 = vmatpush.msra.mxu0 0.0
        %1310 = vmatpush.msra.mxu0 0.0
        %1311 = vmatpush.msra.mxu0 0.0
        %1312 = vmatpush.msra.mxu0 0.0
        %1313 = vmatpush.msra.mxu0 0.0
        %1314 = vmatpush.msra.mxu0 0.0
        %1315 = vmatpush.msra.mxu0 0.0
        %1316 = vmatpush.msra.mxu0 0.0
        %1317 = vmatpush.msra.mxu0 0.0
        %1318 = vmatpush.msra.mxu0 0.0
        %1319 = vmatpush.msra.mxu0 0.0
        %1320 = vmatpush.msra.mxu0 %v1302
        %1321 = vmatpush.msra.mxu0 %v1301
        %1322 = vmatpush.msra.mxu0 %v1300
        %1323 = vmatpush.msra.mxu0 %v1299
        %1324 = vmatmul.f32.gmra.mxu0 %v1306
        %v1325 = vpop.f32.mrf.mxu0
        %v1326 = vadd.f32 %v1304, %v1325
        %1327 = vdwg.mxu0
        %v1328 = vtanh.pop %v1326
        %s1329 = scalar_lea.vmem [#allocation4], 40
        %v1330 = vld [vmem:[%s1329] sm:$0xff]
        %v1331 = vld [vmem:[%s1329 + $0x8] sm:$0xff]
        %v1332 = vld [vmem:[%s1329 + $0x10] sm:$0xff]
        %v1333 = vld [vmem:[%s1329 + $0x18] sm:$0xff]
        %v1334 = vld [vmem:[%s1329 + $0x20] sm:$0x1]
        %v1335 = vperm.slane %v1334, 0
        %v1337 = vsel %vm352, %v1328, 0
        %1339 = vmatpush.msra.mxu0 0.0
        %1340 = vmatpush.msra.mxu0 0.0
        %1341 = vmatpush.msra.mxu0 0.0
        %1342 = vmatpush.msra.mxu0 0.0
        %1343 = vmatpush.msra.mxu0 0.0
        %1344 = vmatpush.msra.mxu0 0.0
        %1345 = vmatpush.msra.mxu0 0.0
        %1346 = vmatpush.msra.mxu0 0.0
        %1347 = vmatpush.msra.mxu0 0.0
        %1348 = vmatpush.msra.mxu0 0.0
        %1349 = vmatpush.msra.mxu0 0.0
        %1350 = vmatpush.msra.mxu0 0.0
        %1351 = vmatpush.msra.mxu0 %v1333
        %1352 = vmatpush.msra.mxu0 %v1332
        %1353 = vmatpush.msra.mxu0 %v1331
        %1354 = vmatpush.msra.mxu0 %v1330
        %1355 = vmatmul.f32.gmra.mxu0 %v1337
        %v1356 = vpop.f32.mrf.mxu0
        %v1357 = vadd.f32 %v1335, %v1356
        %1358 = vdwg.mxu0
        %1359 = vst [vmem:[%s348] sm:$0xff] %v1357
        %p1360 = scmp.lt.s32.totalorder %s21, 1
        %s1361 = scalar_select %p1360, %s21, 1
        %s1362 = smul.addr %s1361, 8
        %s1363 = scalar_lea.vmem %s8, %s1362
        // Predicated region
        $region61: #{forward.1} parent=51 // pred_check
          %p1364 = pneg %p217
        $region62: #{forward.1} parent=51 // pred_check_branch
          %1366 = sbr.rel (%p1364) target = $region64
        $region63: #{forward.1} parent=51 // pred_region
          _
        $region64: #{forward.1} parent=51 // pred_fallthru
          _
      $region52: #{forward.1} parent=5 // pred_fallthru
        _
      %p1367 = scmp.le.s32.totalorder 2, %s16
      // Predicated region
      $region65: #{forward.1} parent=5 // pred_check
        %p1368 = pneg %p1367
      $region66: #{forward.1} parent=5 // pred_check_branch
        %1370 = sbr.rel (%p1368) target = $region68
      $region67: #{forward.1} parent=5 // pred_region
        %s1371 = ssub.s32 %s16, 2
        // Predicated region
        $region69: #{forward.1} parent=67 // pred_check
          %p1372 = pneg %p223
        $region70: #{forward.1} parent=67 // pred_check_branch
          %1374 = sbr.rel (%p1372) target = $region72
        $region71: #{forward.1} parent=67 // pred_region
          %p1375 = scmp.lt.s32.totalorder %s22, 1
          %s1376 = scalar_select %p1375, %s22, 1
          %s1377 = smul.addr %s1376, 8
          %s1378 = scalar_lea.vmem %s8, %s1377
        $region72: #{forward.1} parent=67 // pred_fallthru
          _
      $region68: #{forward.1} parent=5 // pred_fallthru
        _
    $region6: #{forward.1} parent=1 // loop_footer
      %s20 = sadd.s32 1, %s16
    $region7: #{forward.1} parent=1 // loop_footer_branch
      %15 = sbr.rel target = $region3
    $region8: #{forward.1} parent=1 // loop_exit
      _
    %1379 = vsyncpa [#allocation3], 1
    %s1380 = scalar_lea.sflag [#allocation3], 1
    %1381 = vsyncpa %s1380, 1
    %1382 = vsyncpa [#allocation5], 1

</llo_original>
